<compile_context>
chip_gen: v6e
topology: v6e:2x2x1
jax: 0.10.0
libtpu: 0.0.40
codegen_flags: <defaults>
</compile_context>

<pallas_src>
import math
import numpy as np
import jax
import jax.numpy as jnp
from jax import lax
from jax.experimental import pallas as pl
from jax.experimental.pallas import tpu as pltpu

B, D1, D2 = 2, 8, 32          # batch, dim1 (conv channels == LSTM seq_len), dim2 (length == LSTM features)
R = B * D1                    # stacked batch-major rows (row = b*D1 + channel)
EPS = 1e-5                    # BatchNorm1d eps
MXU_DT = jnp.bfloat16         # MXU operand dtype (jnp.float32 for exact f32 matmuls)

MAT_ROWS = 224                # packed weight slab rows (128 lanes wide, MXU_DT)
AUX_ROWS = 24                 # packed bias / vector slab rows (128 lanes wide, f32)


def model_kernel(x_ref, mat_ref, aux_ref, out_ref, xproj_scr, hseq_scr):
    f32 = jnp.float32
    inv_n = 1.0 / float(B * D2)

    # ---------------- packed parameters (static slices of the 2 slab DMAs) ----
    shift = mat_ref[0:32, 0:2 * D2]            # (32, 64)  [eye(k=1) | eye(k=-1)]
    c1w   = mat_ref[32:48, 0:3 * R]            # (16, 48)  fused conv1 taps (block-diag over batch)
    c2w   = mat_ref[48:64, 0:3 * R]            # (16, 48)  fused conv2 taps
    wih   = mat_ref[64:96, :]                  # (32, 128) LSTM W_ih^T, gates i,f,g,o
    whh   = mat_ref[96:128, :]                 # (32, 128) LSTM W_hh^T
    w1    = mat_ref[128:160, 0:D2]             # (32, 32)  attention W1^T
    w2    = mat_ref[160:192, 0:D2]             # (32, 32)  attention W2^T
    v     = mat_ref[192:224, 0:D1]             # (32, 8)   attention V^T

    pe    = aux_ref[0:R, 0:D2]                 # (16, 32)  positional encoding, batch-stacked
    c1b   = aux_ref[0:R, D2 + 0:D2 + 1]        # per-row conv biases / BN affine params
    c2b   = aux_ref[0:R, D2 + 1:D2 + 2]
    g1    = aux_ref[0:R, D2 + 2:D2 + 3]
    be1   = aux_ref[0:R, D2 + 3:D2 + 4]
    g2    = aux_ref[0:R, D2 + 4:D2 + 5]
    be2   = aux_ref[0:R, D2 + 5:D2 + 6]
    lb    = aux_ref[16:17, :]                  # (1, 128)  b_ih + b_hh
    w1b   = aux_ref[17:18, 0:D2]
    w2b   = aux_ref[18:19, 0:D2]
    vbias = aux_ref[19:20, 0:D1]

    x_st = x_ref[...]                          # (R, D2) f32

    # ---------------- conv1 -> conv2 : 2 MXU matmuls per layer ----------------
    def conv_layer(y, wbig, bias_col):
        yb = y.astype(MXU_DT)
        xs = jnp.dot(yb, shift, preferred_element_type=f32)             # (R, 2*D2)
        stack = jnp.concatenate([xs[:, 0:D2].astype(MXU_DT), yb,
                                 xs[:, D2:2 * D2].astype(MXU_DT)], axis=0)  # (3R, D2)
        return jnp.dot(wbig, stack, preferred_element_type=f32) + bias_col

    x1 = conv_layer(conv_layer(x_st, c1w, c1b), c2w, c2b)                # (R, D2)

    # ---------------- BatchNorm1d(dim1), training-mode batch statistics -------
    def batchnorm(y, g_col, be_col):
        rs = jnp.sum(y, axis=1, keepdims=True)                           # (R, 1)
        rq = jnp.sum(y * y, axis=1, keepdims=True)
        s, q = rs[0:D1], rq[0:D1]
        for b in range(1, B):
            s = s + rs[b * D1:(b + 1) * D1]
            q = q + rq[b * D1:(b + 1) * D1]
        mean = s * inv_n                                                  # (D1, 1)
        var = jnp.maximum(q * inv_n - mean * mean, 0.0)
        inv = lax.rsqrt(var + EPS)
        mean_st = jnp.concatenate([mean] * B, axis=0)                     # (R, 1)
        scale_st = jnp.concatenate([inv] * B, axis=0) * g_col
        return (y - mean_st) * scale_st + be_col

    # ---------------- positional encoding + BN1 -------------------------------
    emb = x_st * math.sqrt(D2) + pe
    bn1 = batchnorm(emb, g1, be1)                                          # (R, D2)

    # ---------------- LSTM_A (batched over B, input projection hoisted) -------
    xproj_scr[...] = (jnp.dot(bn1.astype(MXU_DT), wih,
                              preferred_element_type=f32) + lb)            # (R, 4*D2)

    h = jnp.zeros((B, D2), f32)
    c = jnp.zeros((B, D2), f32)
    for t in range(D1):
        xp = jnp.concatenate(
            [xproj_scr[b * D1 + t:b * D1 + t + 1, :] for b in range(B)], axis=0)  # (B, 4*D2)
        gates = xp if t == 0 else xp + jnp.dot(h.astype(MXU_DT), whh,
                                               preferred_element_type=f32)
        sig = jax.nn.sigmoid(gates)                                        # single-vreg EUP push
        i_g = sig[:, 0:D2]
        o_g = sig[:, 3 * D2:4 * D2]
        g_g = jnp.tanh(gates[:, 2 * D2:3 * D2])
        if t == 0:
            c = i_g * g_g
        else:
            c = sig[:, D2:2 * D2] * c + i_g * g_g
        h = o_g * jnp.tanh(c)
        for b in range(B):                                                 # stores off the dep. chain
            hseq_scr[b * D1 + t:b * D1 + t + 1, :] = h[b:b + 1, :]

    # ---------------- Bahdanau attention (self_A), batched over B -------------
    vals = hseq_scr[...]                                                   # (R, D2)
    a1 = jnp.dot(vals.astype(MXU_DT), w1, preferred_element_type=f32) + w1b
    a2 = jnp.dot(h.astype(MXU_DT), w2, preferred_element_type=f32) + w2b   # (B, D2)
    a2_rows = jnp.concatenate(
        [jnp.broadcast_to(a2[b:b + 1, :], (D1, D2)) for b in range(B)], axis=0)
    th = jnp.tanh(a1 + a2_rows)
    score = jnp.dot(th.astype(MXU_DT), v, preferred_element_type=f32) + vbias   # (R, D1)

    ctxs = []
    for b in range(B):
        sc = score[b * D1:(b + 1) * D1, :]                                 # (D1, D1)
        m = jnp.max(sc, axis=0, keepdims=True)                             # softmax over torch dim=1
        e = jnp.exp(sc - m)
        attn = e * pl.reciprocal(jnp.sum(e, axis=0, keepdims=True), approx=False)
        vb = vals[b * D1:(b + 1) * D1, :].astype(MXU_DT)                   # (D1, D2)
        ctxs.append(lax.dot_general(attn.astype(MXU_DT), vb,
                                    (((0,), (0,)), ((), ())),
                                    preferred_element_type=f32))            # ctx[task, d]
    x2 = jnp.concatenate(ctxs, axis=0)                                      # (R, D2)

    # ---------------- out = BatchNorm1d(x1 + x2) -------------------------------
    out = batchnorm(x1 + x2, g2, be2)

    out_ref[:, 0:D2] = out                      # single lane-packed output: [out | x2]
    out_ref[:, D2:2 * D2] = x2


# --------------------------- parameter construction ---------------------------
def _make_pe(d1, d2):
    pe = np.zeros((d1, d2), np.float32)
    pos = np.arange(d1, dtype=np.float32).reshape(-1, 1)
    div0 = np.exp(np.arange(0, d2, 2, dtype=np.float32) * -(math.log(10000.0) / d2))
    div1 = np.exp(np.arange(1, d2, 2, dtype=np.float32) * -(math.log(10000.0) / d2))
    pe[:, 0::2] = np.sin(pos * div0)
    pe[:, 1::2] = np.cos(pos * div1)
    return pe


def _make_shift(length):
    # columns [0:L] -> y[:, l-1] ; columns [L:2L] -> y[:, l+1]  (zero padded)
    return np.concatenate([np.eye(length, k=1), np.eye(length, k=-1)], axis=1).astype(np.float32)


def _fuse_conv_weight(w_taps):
    # (3, D1_out, D1_in) -> (R, 3R) block weight matching the kernel's
    # [x[:,l-1] | x | x[:,l+1]] row-stacked, batch-major layout.
    big = np.zeros((R, 3 * R), np.float32)
    for d in range(3):
        for b in range(B):
            big[b * D1:(b + 1) * D1, d * R + b * D1: d * R + (b + 1) * D1] = w_taps[d]
    return big


def build_params(key):
    ks = jax.random.split(key, 16)

    def rnd(k, shape, scale=0.1):
        return np.asarray(jax.random.normal(k, shape, jnp.float32)) * scale

    c1w = rnd(ks[0], (3, D1, D1)); c1b = rnd(ks[1], (D1,))
    c2w = rnd(ks[2], (3, D1, D1)); c2b = rnd(ks[3], (D1,))
    g1 = 1.0 + rnd(ks[4], (D1,));  be1 = rnd(ks[5], (D1,))
    # LSTM_A (input=hidden=D2), stored pre-transposed; bias = b_ih + b_hh; gate order i,f,g,o
    wih = rnd(ks[6], (D2, 4 * D2)); whh = rnd(ks[7], (D2, 4 * D2))
    lb = rnd(ks[8], (4 * D2,))
    # Bahdanau self_A: W1, W2 (D2->D2), V (D2->D1); stored transposed
    w1 = rnd(ks[9], (D2, D2));     w1b = rnd(ks[10], (D2,))
    w2 = rnd(ks[11], (D2, D2));    w2b = rnd(ks[12], (D2,))
    v = rnd(ks[13], (D2, D1));     vb = rnd(ks[14], (D1,))
    g2 = np.ones((D1,), np.float32); be2 = np.zeros((D1,), np.float32)

    mat = np.zeros((MAT_ROWS, 128), np.float32)
    mat[0:32, 0:2 * D2] = _make_shift(D2)
    mat[32:48, 0:3 * R] = _fuse_conv_weight(c1w)
    mat[48:64, 0:3 * R] = _fuse_conv_weight(c2w)
    mat[64:96, 0:4 * D2] = wih
    mat[96:128, 0:4 * D2] = whh
    mat[128:160, 0:D2] = w1
    mat[160:192, 0:D2] = w2
    mat[192:224, 0:D1] = v

    def tile_b(vec):
        return np.tile(np.asarray(vec, np.float32), B)

    aux = np.zeros((AUX_ROWS, 128), np.float32)
    aux[0:R, 0:D2] = np.tile(_make_pe(D1, D2), (B, 1))
    aux[0:R, D2 + 0] = tile_b(c1b)
    aux[0:R, D2 + 1] = tile_b(c2b)
    aux[0:R, D2 + 2] = tile_b(g1)
    aux[0:R, D2 + 3] = tile_b(be1)
    aux[0:R, D2 + 4] = tile_b(g2)
    aux[0:R, D2 + 5] = tile_b(be2)
    aux[16, 0:4 * D2] = lb
    aux[17, 0:D2] = w1b
    aux[18, 0:D2] = w2b
    aux[19, 0:D1] = vb

    return jnp.asarray(mat, MXU_DT), jnp.asarray(aux, jnp.float32)


@jax.jit
def model_forward(x, mat_slab, aux_slab):
    x_st = x.reshape(R, D2)                       # batch-major stacked rows (free reshape)
    res = pl.pallas_call(
        model_kernel,
        out_shape=jax.ShapeDtypeStruct((R, 2 * D2), jnp.float32),
        in_specs=[pl.BlockSpec(memory_space=pltpu.MemorySpace.VMEM)] * 3,
        out_specs=pl.BlockSpec(memory_space=pltpu.MemorySpace.VMEM),
        scratch_shapes=[pltpu.VMEM((R, 4 * D2), jnp.float32),   # LSTM input projection
                        pltpu.VMEM((R, D2), jnp.float32)],      # LSTM output sequence
    )(x_st, mat_slab, aux_slab)
    out = res[:, 0:D2].reshape(B, D1, D2)
    x2 = res[:, D2:2 * D2].reshape(B, D1, D2)
    return out, x2


if __name__ == "__main__":
    key = jax.random.PRNGKey(0)
    kx, kp = jax.random.split(key)
    x = jax.random.normal(kx, (B, D1, D2), jnp.float32)
    mat_slab, aux_slab = build_params(kp)
    out, x2 = model_forward(x, mat_slab, aux_slab)
    jax.block_until_ready((out, x2))
    assert out.shape == (B, D1, D2) and x2.shape == (B, D1, D2)
    assert bool(jnp.isfinite(out).all()) and bool(jnp.isfinite(x2).all())
    print("KERNEL_OK")
</pallas_src>

<mosaic_0001>
module attributes {stable_mosaic.version = 11 : i64} {
  func.func @model_kernel(%arg0: memref<16x32xf32, #tpu.memory_space<vmem>>, %arg1: memref<224x128xbf16, #tpu.memory_space<vmem>>, %arg2: memref<24x128xf32, #tpu.memory_space<vmem>>, %arg3: memref<16x64xf32, #tpu.memory_space<vmem>>, %arg4: memref<16x128xf32, #tpu.memory_space<vmem>>, %arg5: memref<16x32xf32, #tpu.memory_space<vmem>>) attributes {dimension_semantics = [], scalar_prefetch = 0 : i64, scratch_operands = 2 : i64, tpu.core_type = #tpu.core_type<tc>} {
    %c0 = arith.constant 0 : index
    %c0_0 = arith.constant 0 : index
    %0 = vector.load %arg1[%c0, %c0_0] : memref<224x128xbf16, #tpu.memory_space<vmem>>, vector<32x64xbf16>
    %c32 = arith.constant 32 : index
    %c0_1 = arith.constant 0 : index
    %1 = vector.load %arg1[%c32, %c0_1] : memref<224x128xbf16, #tpu.memory_space<vmem>>, vector<16x48xbf16>
    %c48 = arith.constant 48 : index
    %c0_2 = arith.constant 0 : index
    %2 = vector.load %arg1[%c48, %c0_2] : memref<224x128xbf16, #tpu.memory_space<vmem>>, vector<16x48xbf16>
    %c64 = arith.constant 64 : index
    %c0_3 = arith.constant 0 : index
    %3 = vector.load %arg1[%c64, %c0_3] : memref<224x128xbf16, #tpu.memory_space<vmem>>, vector<32x128xbf16>
    %c96 = arith.constant 96 : index
    %c0_4 = arith.constant 0 : index
    %4 = vector.load %arg1[%c96, %c0_4] : memref<224x128xbf16, #tpu.memory_space<vmem>>, vector<32x128xbf16>
    %c128 = arith.constant 128 : index
    %c0_5 = arith.constant 0 : index
    %5 = vector.load %arg1[%c128, %c0_5] : memref<224x128xbf16, #tpu.memory_space<vmem>>, vector<32x32xbf16>
    %c160 = arith.constant 160 : index
    %c0_6 = arith.constant 0 : index
    %6 = vector.load %arg1[%c160, %c0_6] : memref<224x128xbf16, #tpu.memory_space<vmem>>, vector<32x32xbf16>
    %c192 = arith.constant 192 : index
    %c0_7 = arith.constant 0 : index
    %7 = vector.load %arg1[%c192, %c0_7] : memref<224x128xbf16, #tpu.memory_space<vmem>>, vector<32x8xbf16>
    %c0_8 = arith.constant 0 : index
    %c0_9 = arith.constant 0 : index
    %8 = vector.load %arg2[%c0_8, %c0_9] : memref<24x128xf32, #tpu.memory_space<vmem>>, vector<16x32xf32>
    %c0_10 = arith.constant 0 : index
    %c32_11 = arith.constant 32 : index
    %9 = vector.load %arg2[%c0_10, %c32_11] : memref<24x128xf32, #tpu.memory_space<vmem>>, vector<16x1xf32>
    %c0_12 = arith.constant 0 : index
    %c33 = arith.constant 33 : index
    %10 = vector.load %arg2[%c0_12, %c33] : memref<24x128xf32, #tpu.memory_space<vmem>>, vector<16x1xf32>
    %c0_13 = arith.constant 0 : index
    %c34 = arith.constant 34 : index
    %11 = vector.load %arg2[%c0_13, %c34] : memref<24x128xf32, #tpu.memory_space<vmem>>, vector<16x1xf32>
    %c0_14 = arith.constant 0 : index
    %c35 = arith.constant 35 : index
    %12 = vector.load %arg2[%c0_14, %c35] : memref<24x128xf32, #tpu.memory_space<vmem>>, vector<16x1xf32>
    %c0_15 = arith.constant 0 : index
    %c36 = arith.constant 36 : index
    %13 = vector.load %arg2[%c0_15, %c36] : memref<24x128xf32, #tpu.memory_space<vmem>>, vector<16x1xf32>
    %c0_16 = arith.constant 0 : index
    %c37 = arith.constant 37 : index
    %14 = vector.load %arg2[%c0_16, %c37] : memref<24x128xf32, #tpu.memory_space<vmem>>, vector<16x1xf32>
    %c16 = arith.constant 16 : index
    %c0_17 = arith.constant 0 : index
    %15 = vector.load %arg2[%c16, %c0_17] : memref<24x128xf32, #tpu.memory_space<vmem>>, vector<1x128xf32>
    %c17 = arith.constant 17 : index
    %c0_18 = arith.constant 0 : index
    %16 = vector.load %arg2[%c17, %c0_18] : memref<24x128xf32, #tpu.memory_space<vmem>>, vector<1x32xf32>
    %c18 = arith.constant 18 : index
    %c0_19 = arith.constant 0 : index
    %17 = vector.load %arg2[%c18, %c0_19] : memref<24x128xf32, #tpu.memory_space<vmem>>, vector<1x32xf32>
    %c19 = arith.constant 19 : index
    %c0_20 = arith.constant 0 : index
    %18 = vector.load %arg2[%c19, %c0_20] : memref<24x128xf32, #tpu.memory_space<vmem>>, vector<1x8xf32>
    %c0_21 = arith.constant 0 : index
    %c0_22 = arith.constant 0 : index
    %19 = vector.load %arg0[%c0_21, %c0_22] : memref<16x32xf32, #tpu.memory_space<vmem>>, vector<16x32xf32>
    %20 = arith.truncf %19 : vector<16x32xf32> to vector<16x32xbf16>
    %cst = arith.constant dense<0.000000e+00> : vector<16x64xf32>
    %21 = tpu.matmul %20, %0, %cst {dimension_numbers = #tpu.dot_dimension_numbers<[1], [0], [0], [1], [0, 0, 1, 1], [], []>} : vector<16x32xbf16>, vector<32x64xbf16>, vector<16x64xf32> -> vector<16x64xf32>
    %22 = vector.extract_strided_slice %21 {offsets = [0, 0], sizes = [16, 32], strides = [1, 1]} : vector<16x64xf32> to vector<16x32xf32>
    %23 = arith.truncf %22 : vector<16x32xf32> to vector<16x32xbf16>
    %24 = vector.extract_strided_slice %21 {offsets = [0, 32], sizes = [16, 32], strides = [1, 1]} : vector<16x64xf32> to vector<16x32xf32>
    %25 = arith.truncf %24 : vector<16x32xf32> to vector<16x32xbf16>
    %26 = tpu.concatenate %23, %20, %25 in 0 : vector<16x32xbf16>, vector<16x32xbf16>, vector<16x32xbf16> -> vector<48x32xbf16>
    %cst_23 = arith.constant dense<0.000000e+00> : vector<16x32xf32>
    %27 = tpu.matmul %1, %26, %cst_23 {dimension_numbers = #tpu.dot_dimension_numbers<[1], [0], [0], [1], [0, 0, 1, 1], [], []>} : vector<16x48xbf16>, vector<48x32xbf16>, vector<16x32xf32> -> vector<16x32xf32>
    %28 = vector.broadcast %9 : vector<16x1xf32> to vector<16x32xf32>
    %29 = arith.addf %27, %28 : vector<16x32xf32>
    %30 = arith.truncf %29 : vector<16x32xf32> to vector<16x32xbf16>
    %cst_24 = arith.constant dense<0.000000e+00> : vector<16x64xf32>
    %31 = tpu.matmul %30, %0, %cst_24 {dimension_numbers = #tpu.dot_dimension_numbers<[1], [0], [0], [1], [0, 0, 1, 1], [], []>} : vector<16x32xbf16>, vector<32x64xbf16>, vector<16x64xf32> -> vector<16x64xf32>
    %32 = vector.extract_strided_slice %31 {offsets = [0, 0], sizes = [16, 32], strides = [1, 1]} : vector<16x64xf32> to vector<16x32xf32>
    %33 = arith.truncf %32 : vector<16x32xf32> to vector<16x32xbf16>
    %34 = vector.extract_strided_slice %31 {offsets = [0, 32], sizes = [16, 32], strides = [1, 1]} : vector<16x64xf32> to vector<16x32xf32>
    %35 = arith.truncf %34 : vector<16x32xf32> to vector<16x32xbf16>
    %36 = tpu.concatenate %33, %30, %35 in 0 : vector<16x32xbf16>, vector<16x32xbf16>, vector<16x32xbf16> -> vector<48x32xbf16>
    %cst_25 = arith.constant dense<0.000000e+00> : vector<16x32xf32>
    %37 = tpu.matmul %2, %36, %cst_25 {dimension_numbers = #tpu.dot_dimension_numbers<[1], [0], [0], [1], [0, 0, 1, 1], [], []>} : vector<16x48xbf16>, vector<48x32xbf16>, vector<16x32xf32> -> vector<16x32xf32>
    %38 = vector.broadcast %10 : vector<16x1xf32> to vector<16x32xf32>
    %39 = arith.addf %37, %38 : vector<16x32xf32>
    %cst_26 = arith.constant 5.65685415 : f32
    %40 = vector.broadcast %cst_26 : f32 to vector<16x32xf32>
    %41 = arith.mulf %19, %40 : vector<16x32xf32>
    %42 = arith.addf %41, %8 : vector<16x32xf32>
    %cst_27 = arith.constant dense<0.000000e+00> : vector<16xf32>
    %43 = vector.multi_reduction <add>, %42, %cst_27 [1] : vector<16x32xf32> to vector<16xf32>
    %44 = vector.shape_cast %43 : vector<16xf32> to vector<16x1xf32>
    %45 = arith.mulf %42, %42 : vector<16x32xf32>
    %cst_28 = arith.constant dense<0.000000e+00> : vector<16xf32>
    %46 = vector.multi_reduction <add>, %45, %cst_28 [1] : vector<16x32xf32> to vector<16xf32>
    %47 = vector.shape_cast %46 : vector<16xf32> to vector<16x1xf32>
    %48 = vector.extract_strided_slice %44 {offsets = [0, 0], sizes = [8, 1], strides = [1, 1]} : vector<16x1xf32> to vector<8x1xf32>
    %49 = vector.extract_strided_slice %47 {offsets = [0, 0], sizes = [8, 1], strides = [1, 1]} : vector<16x1xf32> to vector<8x1xf32>
    %50 = vector.extract_strided_slice %44 {offsets = [8, 0], sizes = [8, 1], strides = [1, 1]} : vector<16x1xf32> to vector<8x1xf32>
    %51 = arith.addf %48, %50 : vector<8x1xf32>
    %52 = vector.extract_strided_slice %47 {offsets = [8, 0], sizes = [8, 1], strides = [1, 1]} : vector<16x1xf32> to vector<8x1xf32>
    %53 = arith.addf %49, %52 : vector<8x1xf32>
    %cst_29 = arith.constant 1.562500e-02 : f32
    %54 = vector.broadcast %cst_29 : f32 to vector<8x1xf32>
    %55 = arith.mulf %51, %54 : vector<8x1xf32>
    %cst_30 = arith.constant 1.562500e-02 : f32
    %56 = vector.broadcast %cst_30 : f32 to vector<8x1xf32>
    %57 = arith.mulf %53, %56 : vector<8x1xf32>
    %58 = arith.mulf %55, %55 : vector<8x1xf32>
    %59 = arith.subf %57, %58 : vector<8x1xf32>
    %cst_31 = arith.constant 0.000000e+00 : f32
    %60 = vector.broadcast %cst_31 : f32 to vector<8x1xf32>
    %61 = arith.maximumf %59, %60 : vector<8x1xf32>
    %cst_32 = arith.constant 9.99999974E-6 : f32
    %62 = vector.broadcast %cst_32 : f32 to vector<8x1xf32>
    %63 = arith.addf %61, %62 : vector<8x1xf32>
    %64 = math.rsqrt %63 : vector<8x1xf32>
    %65 = tpu.concatenate %55, %55 in 0 : vector<8x1xf32>, vector<8x1xf32> -> vector<16x1xf32>
    %66 = tpu.concatenate %64, %64 in 0 : vector<8x1xf32>, vector<8x1xf32> -> vector<16x1xf32>
    %67 = arith.mulf %66, %11 : vector<16x1xf32>
    %68 = vector.broadcast %65 : vector<16x1xf32> to vector<16x32xf32>
    %69 = arith.subf %42, %68 : vector<16x32xf32>
    %70 = vector.broadcast %67 : vector<16x1xf32> to vector<16x32xf32>
    %71 = arith.mulf %69, %70 : vector<16x32xf32>
    %72 = vector.broadcast %12 : vector<16x1xf32> to vector<16x32xf32>
    %73 = arith.addf %71, %72 : vector<16x32xf32>
    %74 = arith.truncf %73 : vector<16x32xf32> to vector<16x32xbf16>
    %cst_33 = arith.constant dense<0.000000e+00> : vector<16x128xf32>
    %75 = tpu.matmul %74, %3, %cst_33 {dimension_numbers = #tpu.dot_dimension_numbers<[1], [0], [0], [1], [0, 0, 1, 1], [], []>} : vector<16x32xbf16>, vector<32x128xbf16>, vector<16x128xf32> -> vector<16x128xf32>
    %76 = vector.broadcast %15 : vector<1x128xf32> to vector<16x128xf32>
    %77 = arith.addf %75, %76 : vector<16x128xf32>
    %c0_34 = arith.constant 0 : index
    %c0_35 = arith.constant 0 : index
    %78 = vector.load %arg4[%c0_34, %c0_35] : memref<16x128xf32, #tpu.memory_space<vmem>>, vector<16x128xf32>
    tpu.vector_store %arg4[%c0_34, %c0_35], %77 {strides = array<i32>} : memref<16x128xf32, #tpu.memory_space<vmem>>, vector<16x128xf32>,
    %c0_36 = arith.constant 0 : index
    %c0_37 = arith.constant 0 : index
    %79 = vector.load %arg4[%c0_36, %c0_37] : memref<16x128xf32, #tpu.memory_space<vmem>>, vector<1x128xf32>
    %c8 = arith.constant 8 : index
    %c0_38 = arith.constant 0 : index
    %80 = vector.load %arg4[%c8, %c0_38] : memref<16x128xf32, #tpu.memory_space<vmem>>, vector<1x128xf32>
    %81 = tpu.concatenate %79, %80 in 0 : vector<1x128xf32>, vector<1x128xf32> -> vector<2x128xf32>
    %82 = arith.negf %81 : vector<2x128xf32>
    %83 = math.exp %82 : vector<2x128xf32>
    %cst_39 = arith.constant 1.000000e+00 : f32
    %84 = vector.broadcast %cst_39 : f32 to vector<2x128xf32>
    %85 = arith.addf %84, %83 : vector<2x128xf32>
    %86 = arith.divf %84, %85 : vector<2x128xf32>
    %87 = vector.extract_strided_slice %86 {offsets = [0, 0], sizes = [2, 32], strides = [1, 1]} : vector<2x128xf32> to vector<2x32xf32>
    %88 = vector.extract_strided_slice %86 {offsets = [0, 96], sizes = [2, 32], strides = [1, 1]} : vector<2x128xf32> to vector<2x32xf32>
    %89 = vector.extract_strided_slice %81 {offsets = [0, 64], sizes = [2, 32], strides = [1, 1]} : vector<2x128xf32> to vector<2x32xf32>
    %90 = math.tanh %89 : vector<2x32xf32>
    %91 = arith.mulf %87, %90 : vector<2x32xf32>
    %92 = math.tanh %91 : vector<2x32xf32>
    %93 = arith.mulf %88, %92 : vector<2x32xf32>
    %94 = vector.extract_strided_slice %93 {offsets = [0, 0], sizes = [1, 32], strides = [1, 1]} : vector<2x32xf32> to vector<1x32xf32>
    %c0_40 = arith.constant 0 : index
    %c0_41 = arith.constant 0 : index
    %95 = vector.load %arg5[%c0_40, %c0_41] : memref<16x32xf32, #tpu.memory_space<vmem>>, vector<1x32xf32>
    tpu.vector_store %arg5[%c0_40, %c0_41], %94 {strides = array<i32>} : memref<16x32xf32, #tpu.memory_space<vmem>>, vector<1x32xf32>,
    %96 = vector.extract_strided_slice %93 {offsets = [1, 0], sizes = [1, 32], strides = [1, 1]} : vector<2x32xf32> to vector<1x32xf32>
    %c8_42 = arith.constant 8 : index
    %c0_43 = arith.constant 0 : index
    %97 = vector.load %arg5[%c8_42, %c0_43] : memref<16x32xf32, #tpu.memory_space<vmem>>, vector<1x32xf32>
    tpu.vector_store %arg5[%c8_42, %c0_43], %96 {strides = array<i32>} : memref<16x32xf32, #tpu.memory_space<vmem>>, vector<1x32xf32>,
    %c1 = arith.constant 1 : index
    %c0_44 = arith.constant 0 : index
    %98 = vector.load %arg4[%c1, %c0_44] : memref<16x128xf32, #tpu.memory_space<vmem>>, vector<1x128xf32>
    %c9 = arith.constant 9 : index
    %c0_45 = arith.constant 0 : index
    %99 = vector.load %arg4[%c9, %c0_45] : memref<16x128xf32, #tpu.memory_space<vmem>>, vector<1x128xf32>
    %100 = tpu.concatenate %98, %99 in 0 : vector<1x128xf32>, vector<1x128xf32> -> vector<2x128xf32>
    %101 = arith.truncf %93 : vector<2x32xf32> to vector<2x32xbf16>
    %cst_46 = arith.constant dense<0.000000e+00> : vector<2x128xf32>
    %102 = tpu.matmul %101, %4, %cst_46 {dimension_numbers = #tpu.dot_dimension_numbers<[1], [0], [0], [1], [0, 0, 1, 1], [], []>} : vector<2x32xbf16>, vector<32x128xbf16>, vector<2x128xf32> -> vector<2x128xf32>
    %103 = arith.addf %100, %102 : vector<2x128xf32>
    %104 = arith.negf %103 : vector<2x128xf32>
    %105 = math.exp %104 : vector<2x128xf32>
    %cst_47 = arith.constant 1.000000e+00 : f32
    %106 = vector.broadcast %cst_47 : f32 to vector<2x128xf32>
    %107 = arith.addf %106, %105 : vector<2x128xf32>
    %108 = arith.divf %106, %107 : vector<2x128xf32>
    %109 = vector.extract_strided_slice %108 {offsets = [0, 0], sizes = [2, 32], strides = [1, 1]} : vector<2x128xf32> to vector<2x32xf32>
    %110 = vector.extract_strided_slice %108 {offsets = [0, 96], sizes = [2, 32], strides = [1, 1]} : vector<2x128xf32> to vector<2x32xf32>
    %111 = vector.extract_strided_slice %103 {offsets = [0, 64], sizes = [2, 32], strides = [1, 1]} : vector<2x128xf32> to vector<2x32xf32>
    %112 = math.tanh %111 : vector<2x32xf32>
    %113 = vector.extract_strided_slice %108 {offsets = [0, 32], sizes = [2, 32], strides = [1, 1]} : vector<2x128xf32> to vector<2x32xf32>
    %114 = arith.mulf %113, %91 : vector<2x32xf32>
    %115 = arith.mulf %109, %112 : vector<2x32xf32>
    %116 = arith.addf %114, %115 : vector<2x32xf32>
    %117 = math.tanh %116 : vector<2x32xf32>
    %118 = arith.mulf %110, %117 : vector<2x32xf32>
    %119 = vector.extract_strided_slice %118 {offsets = [0, 0], sizes = [1, 32], strides = [1, 1]} : vector<2x32xf32> to vector<1x32xf32>
    %c1_48 = arith.constant 1 : index
    %c0_49 = arith.constant 0 : index
    %120 = vector.load %arg5[%c1_48, %c0_49] : memref<16x32xf32, #tpu.memory_space<vmem>>, vector<1x32xf32>
    tpu.vector_store %arg5[%c1_48, %c0_49], %119 {strides = array<i32>} : memref<16x32xf32, #tpu.memory_space<vmem>>, vector<1x32xf32>,
    %121 = vector.extract_strided_slice %118 {offsets = [1, 0], sizes = [1, 32], strides = [1, 1]} : vector<2x32xf32> to vector<1x32xf32>
    %c9_50 = arith.constant 9 : index
    %c0_51 = arith.constant 0 : index
    %122 = vector.load %arg5[%c9_50, %c0_51] : memref<16x32xf32, #tpu.memory_space<vmem>>, vector<1x32xf32>
    tpu.vector_store %arg5[%c9_50, %c0_51], %121 {strides = array<i32>} : memref<16x32xf32, #tpu.memory_space<vmem>>, vector<1x32xf32>,
    %c2 = arith.constant 2 : index
    %c0_52 = arith.constant 0 : index
    %123 = vector.load %arg4[%c2, %c0_52] : memref<16x128xf32, #tpu.memory_space<vmem>>, vector<1x128xf32>
    %c10 = arith.constant 10 : index
    %c0_53 = arith.constant 0 : index
    %124 = vector.load %arg4[%c10, %c0_53] : memref<16x128xf32, #tpu.memory_space<vmem>>, vector<1x128xf32>
    %125 = tpu.concatenate %123, %124 in 0 : vector<1x128xf32>, vector<1x128xf32> -> vector<2x128xf32>
    %126 = arith.truncf %118 : vector<2x32xf32> to vector<2x32xbf16>
    %cst_54 = arith.constant dense<0.000000e+00> : vector<2x128xf32>
    %127 = tpu.matmul %126, %4, %cst_54 {dimension_numbers = #tpu.dot_dimension_numbers<[1], [0], [0], [1], [0, 0, 1, 1], [], []>} : vector<2x32xbf16>, vector<32x128xbf16>, vector<2x128xf32> -> vector<2x128xf32>
    %128 = arith.addf %125, %127 : vector<2x128xf32>
    %129 = arith.negf %128 : vector<2x128xf32>
    %130 = math.exp %129 : vector<2x128xf32>
    %cst_55 = arith.constant 1.000000e+00 : f32
    %131 = vector.broadcast %cst_55 : f32 to vector<2x128xf32>
    %132 = arith.addf %131, %130 : vector<2x128xf32>
    %133 = arith.divf %131, %132 : vector<2x128xf32>
    %134 = vector.extract_strided_slice %133 {offsets = [0, 0], sizes = [2, 32], strides = [1, 1]} : vector<2x128xf32> to vector<2x32xf32>
    %135 = vector.extract_strided_slice %133 {offsets = [0, 96], sizes = [2, 32], strides = [1, 1]} : vector<2x128xf32> to vector<2x32xf32>
    %136 = vector.extract_strided_slice %128 {offsets = [0, 64], sizes = [2, 32], strides = [1, 1]} : vector<2x128xf32> to vector<2x32xf32>
    %137 = math.tanh %136 : vector<2x32xf32>
    %138 = vector.extract_strided_slice %133 {offsets = [0, 32], sizes = [2, 32], strides = [1, 1]} : vector<2x128xf32> to vector<2x32xf32>
    %139 = arith.mulf %138, %116 : vector<2x32xf32>
    %140 = arith.mulf %134, %137 : vector<2x32xf32>
    %141 = arith.addf %139, %140 : vector<2x32xf32>
    %142 = math.tanh %141 : vector<2x32xf32>
    %143 = arith.mulf %135, %142 : vector<2x32xf32>
    %144 = vector.extract_strided_slice %143 {offsets = [0, 0], sizes = [1, 32], strides = [1, 1]} : vector<2x32xf32> to vector<1x32xf32>
    %c2_56 = arith.constant 2 : index
    %c0_57 = arith.constant 0 : index
    %145 = vector.load %arg5[%c2_56, %c0_57] : memref<16x32xf32, #tpu.memory_space<vmem>>, vector<1x32xf32>
    tpu.vector_store %arg5[%c2_56, %c0_57], %144 {strides = array<i32>} : memref<16x32xf32, #tpu.memory_space<vmem>>, vector<1x32xf32>,
    %146 = vector.extract_strided_slice %143 {offsets = [1, 0], sizes = [1, 32], strides = [1, 1]} : vector<2x32xf32> to vector<1x32xf32>
    %c10_58 = arith.constant 10 : index
    %c0_59 = arith.constant 0 : index
    %147 = vector.load %arg5[%c10_58, %c0_59] : memref<16x32xf32, #tpu.memory_space<vmem>>, vector<1x32xf32>
    tpu.vector_store %arg5[%c10_58, %c0_59], %146 {strides = array<i32>} : memref<16x32xf32, #tpu.memory_space<vmem>>, vector<1x32xf32>,
    %c3 = arith.constant 3 : index
    %c0_60 = arith.constant 0 : index
    %148 = vector.load %arg4[%c3, %c0_60] : memref<16x128xf32, #tpu.memory_space<vmem>>, vector<1x128xf32>
    %c11 = arith.constant 11 : index
    %c0_61 = arith.constant 0 : index
    %149 = vector.load %arg4[%c11, %c0_61] : memref<16x128xf32, #tpu.memory_space<vmem>>, vector<1x128xf32>
    %150 = tpu.concatenate %148, %149 in 0 : vector<1x128xf32>, vector<1x128xf32> -> vector<2x128xf32>
    %151 = arith.truncf %143 : vector<2x32xf32> to vector<2x32xbf16>
    %cst_62 = arith.constant dense<0.000000e+00> : vector<2x128xf32>
    %152 = tpu.matmul %151, %4, %cst_62 {dimension_numbers = #tpu.dot_dimension_numbers<[1], [0], [0], [1], [0, 0, 1, 1], [], []>} : vector<2x32xbf16>, vector<32x128xbf16>, vector<2x128xf32> -> vector<2x128xf32>
    %153 = arith.addf %150, %152 : vector<2x128xf32>
    %154 = arith.negf %153 : vector<2x128xf32>
    %155 = math.exp %154 : vector<2x128xf32>
    %cst_63 = arith.constant 1.000000e+00 : f32
    %156 = vector.broadcast %cst_63 : f32 to vector<2x128xf32>
    %157 = arith.addf %156, %155 : vector<2x128xf32>
    %158 = arith.divf %156, %157 : vector<2x128xf32>
    %159 = vector.extract_strided_slice %158 {offsets = [0, 0], sizes = [2, 32], strides = [1, 1]} : vector<2x128xf32> to vector<2x32xf32>
    %160 = vector.extract_strided_slice %158 {offsets = [0, 96], sizes = [2, 32], strides = [1, 1]} : vector<2x128xf32> to vector<2x32xf32>
    %161 = vector.extract_strided_slice %153 {offsets = [0, 64], sizes = [2, 32], strides = [1, 1]} : vector<2x128xf32> to vector<2x32xf32>
    %162 = math.tanh %161 : vector<2x32xf32>
    %163 = vector.extract_strided_slice %158 {offsets = [0, 32], sizes = [2, 32], strides = [1, 1]} : vector<2x128xf32> to vector<2x32xf32>
    %164 = arith.mulf %163, %141 : vector<2x32xf32>
    %165 = arith.mulf %159, %162 : vector<2x32xf32>
    %166 = arith.addf %164, %165 : vector<2x32xf32>
    %167 = math.tanh %166 : vector<2x32xf32>
    %168 = arith.mulf %160, %167 : vector<2x32xf32>
    %169 = vector.extract_strided_slice %168 {offsets = [0, 0], sizes = [1, 32], strides = [1, 1]} : vector<2x32xf32> to vector<1x32xf32>
    %c3_64 = arith.constant 3 : index
    %c0_65 = arith.constant 0 : index
    %170 = vector.load %arg5[%c3_64, %c0_65] : memref<16x32xf32, #tpu.memory_space<vmem>>, vector<1x32xf32>
    tpu.vector_store %arg5[%c3_64, %c0_65], %169 {strides = array<i32>} : memref<16x32xf32, #tpu.memory_space<vmem>>, vector<1x32xf32>,
    %171 = vector.extract_strided_slice %168 {offsets = [1, 0], sizes = [1, 32], strides = [1, 1]} : vector<2x32xf32> to vector<1x32xf32>
    %c11_66 = arith.constant 11 : index
    %c0_67 = arith.constant 0 : index
    %172 = vector.load %arg5[%c11_66, %c0_67] : memref<16x32xf32, #tpu.memory_space<vmem>>, vector<1x32xf32>
    tpu.vector_store %arg5[%c11_66, %c0_67], %171 {strides = array<i32>} : memref<16x32xf32, #tpu.memory_space<vmem>>, vector<1x32xf32>,
    %c4 = arith.constant 4 : index
    %c0_68 = arith.constant 0 : index
    %173 = vector.load %arg4[%c4, %c0_68] : memref<16x128xf32, #tpu.memory_space<vmem>>, vector<1x128xf32>
    %c12 = arith.constant 12 : index
    %c0_69 = arith.constant 0 : index
    %174 = vector.load %arg4[%c12, %c0_69] : memref<16x128xf32, #tpu.memory_space<vmem>>, vector<1x128xf32>
    %175 = tpu.concatenate %173, %174 in 0 : vector<1x128xf32>, vector<1x128xf32> -> vector<2x128xf32>
    %176 = arith.truncf %168 : vector<2x32xf32> to vector<2x32xbf16>
    %cst_70 = arith.constant dense<0.000000e+00> : vector<2x128xf32>
    %177 = tpu.matmul %176, %4, %cst_70 {dimension_numbers = #tpu.dot_dimension_numbers<[1], [0], [0], [1], [0, 0, 1, 1], [], []>} : vector<2x32xbf16>, vector<32x128xbf16>, vector<2x128xf32> -> vector<2x128xf32>
    %178 = arith.addf %175, %177 : vector<2x128xf32>
    %179 = arith.negf %178 : vector<2x128xf32>
    %180 = math.exp %179 : vector<2x128xf32>
    %cst_71 = arith.constant 1.000000e+00 : f32
    %181 = vector.broadcast %cst_71 : f32 to vector<2x128xf32>
    %182 = arith.addf %181, %180 : vector<2x128xf32>
    %183 = arith.divf %181, %182 : vector<2x128xf32>
    %184 = vector.extract_strided_slice %183 {offsets = [0, 0], sizes = [2, 32], strides = [1, 1]} : vector<2x128xf32> to vector<2x32xf32>
    %185 = vector.extract_strided_slice %183 {offsets = [0, 96], sizes = [2, 32], strides = [1, 1]} : vector<2x128xf32> to vector<2x32xf32>
    %186 = vector.extract_strided_slice %178 {offsets = [0, 64], sizes = [2, 32], strides = [1, 1]} : vector<2x128xf32> to vector<2x32xf32>
    %187 = math.tanh %186 : vector<2x32xf32>
    %188 = vector.extract_strided_slice %183 {offsets = [0, 32], sizes = [2, 32], strides = [1, 1]} : vector<2x128xf32> to vector<2x32xf32>
    %189 = arith.mulf %188, %166 : vector<2x32xf32>
    %190 = arith.mulf %184, %187 : vector<2x32xf32>
    %191 = arith.addf %189, %190 : vector<2x32xf32>
    %192 = math.tanh %191 : vector<2x32xf32>
    %193 = arith.mulf %185, %192 : vector<2x32xf32>
    %194 = vector.extract_strided_slice %193 {offsets = [0, 0], sizes = [1, 32], strides = [1, 1]} : vector<2x32xf32> to vector<1x32xf32>
    %c4_72 = arith.constant 4 : index
    %c0_73 = arith.constant 0 : index
    %195 = vector.load %arg5[%c4_72, %c0_73] : memref<16x32xf32, #tpu.memory_space<vmem>>, vector<1x32xf32>
    tpu.vector_store %arg5[%c4_72, %c0_73], %194 {strides = array<i32>} : memref<16x32xf32, #tpu.memory_space<vmem>>, vector<1x32xf32>,
    %196 = vector.extract_strided_slice %193 {offsets = [1, 0], sizes = [1, 32], strides = [1, 1]} : vector<2x32xf32> to vector<1x32xf32>
    %c12_74 = arith.constant 12 : index
    %c0_75 = arith.constant 0 : index
    %197 = vector.load %arg5[%c12_74, %c0_75] : memref<16x32xf32, #tpu.memory_space<vmem>>, vector<1x32xf32>
    tpu.vector_store %arg5[%c12_74, %c0_75], %196 {strides = array<i32>} : memref<16x32xf32, #tpu.memory_space<vmem>>, vector<1x32xf32>,
    %c5 = arith.constant 5 : index
    %c0_76 = arith.constant 0 : index
    %198 = vector.load %arg4[%c5, %c0_76] : memref<16x128xf32, #tpu.memory_space<vmem>>, vector<1x128xf32>
    %c13 = arith.constant 13 : index
    %c0_77 = arith.constant 0 : index
    %199 = vector.load %arg4[%c13, %c0_77] : memref<16x128xf32, #tpu.memory_space<vmem>>, vector<1x128xf32>
    %200 = tpu.concatenate %198, %199 in 0 : vector<1x128xf32>, vector<1x128xf32> -> vector<2x128xf32>
    %201 = arith.truncf %193 : vector<2x32xf32> to vector<2x32xbf16>
    %cst_78 = arith.constant dense<0.000000e+00> : vector<2x128xf32>
    %202 = tpu.matmul %201, %4, %cst_78 {dimension_numbers = #tpu.dot_dimension_numbers<[1], [0], [0], [1], [0, 0, 1, 1], [], []>} : vector<2x32xbf16>, vector<32x128xbf16>, vector<2x128xf32> -> vector<2x128xf32>
    %203 = arith.addf %200, %202 : vector<2x128xf32>
    %204 = arith.negf %203 : vector<2x128xf32>
    %205 = math.exp %204 : vector<2x128xf32>
    %cst_79 = arith.constant 1.000000e+00 : f32
    %206 = vector.broadcast %cst_79 : f32 to vector<2x128xf32>
    %207 = arith.addf %206, %205 : vector<2x128xf32>
    %208 = arith.divf %206, %207 : vector<2x128xf32>
    %209 = vector.extract_strided_slice %208 {offsets = [0, 0], sizes = [2, 32], strides = [1, 1]} : vector<2x128xf32> to vector<2x32xf32>
    %210 = vector.extract_strided_slice %208 {offsets = [0, 96], sizes = [2, 32], strides = [1, 1]} : vector<2x128xf32> to vector<2x32xf32>
    %211 = vector.extract_strided_slice %203 {offsets = [0, 64], sizes = [2, 32], strides = [1, 1]} : vector<2x128xf32> to vector<2x32xf32>
    %212 = math.tanh %211 : vector<2x32xf32>
    %213 = vector.extract_strided_slice %208 {offsets = [0, 32], sizes = [2, 32], strides = [1, 1]} : vector<2x128xf32> to vector<2x32xf32>
    %214 = arith.mulf %213, %191 : vector<2x32xf32>
    %215 = arith.mulf %209, %212 : vector<2x32xf32>
    %216 = arith.addf %214, %215 : vector<2x32xf32>
    %217 = math.tanh %216 : vector<2x32xf32>
    %218 = arith.mulf %210, %217 : vector<2x32xf32>
    %219 = vector.extract_strided_slice %218 {offsets = [0, 0], sizes = [1, 32], strides = [1, 1]} : vector<2x32xf32> to vector<1x32xf32>
    %c5_80 = arith.constant 5 : index
    %c0_81 = arith.constant 0 : index
    %220 = vector.load %arg5[%c5_80, %c0_81] : memref<16x32xf32, #tpu.memory_space<vmem>>, vector<1x32xf32>
    tpu.vector_store %arg5[%c5_80, %c0_81], %219 {strides = array<i32>} : memref<16x32xf32, #tpu.memory_space<vmem>>, vector<1x32xf32>,
    %221 = vector.extract_strided_slice %218 {offsets = [1, 0], sizes = [1, 32], strides = [1, 1]} : vector<2x32xf32> to vector<1x32xf32>
    %c13_82 = arith.constant 13 : index
    %c0_83 = arith.constant 0 : index
    %222 = vector.load %arg5[%c13_82, %c0_83] : memref<16x32xf32, #tpu.memory_space<vmem>>, vector<1x32xf32>
    tpu.vector_store %arg5[%c13_82, %c0_83], %221 {strides = array<i32>} : memref<16x32xf32, #tpu.memory_space<vmem>>, vector<1x32xf32>,
    %c6 = arith.constant 6 : index
    %c0_84 = arith.constant 0 : index
    %223 = vector.load %arg4[%c6, %c0_84] : memref<16x128xf32, #tpu.memory_space<vmem>>, vector<1x128xf32>
    %c14 = arith.constant 14 : index
    %c0_85 = arith.constant 0 : index
    %224 = vector.load %arg4[%c14, %c0_85] : memref<16x128xf32, #tpu.memory_space<vmem>>, vector<1x128xf32>
    %225 = tpu.concatenate %223, %224 in 0 : vector<1x128xf32>, vector<1x128xf32> -> vector<2x128xf32>
    %226 = arith.truncf %218 : vector<2x32xf32> to vector<2x32xbf16>
    %cst_86 = arith.constant dense<0.000000e+00> : vector<2x128xf32>
    %227 = tpu.matmul %226, %4, %cst_86 {dimension_numbers = #tpu.dot_dimension_numbers<[1], [0], [0], [1], [0, 0, 1, 1], [], []>} : vector<2x32xbf16>, vector<32x128xbf16>, vector<2x128xf32> -> vector<2x128xf32>
    %228 = arith.addf %225, %227 : vector<2x128xf32>
    %229 = arith.negf %228 : vector<2x128xf32>
    %230 = math.exp %229 : vector<2x128xf32>
    %cst_87 = arith.constant 1.000000e+00 : f32
    %231 = vector.broadcast %cst_87 : f32 to vector<2x128xf32>
    %232 = arith.addf %231, %230 : vector<2x128xf32>
    %233 = arith.divf %231, %232 : vector<2x128xf32>
    %234 = vector.extract_strided_slice %233 {offsets = [0, 0], sizes = [2, 32], strides = [1, 1]} : vector<2x128xf32> to vector<2x32xf32>
    %235 = vector.extract_strided_slice %233 {offsets = [0, 96], sizes = [2, 32], strides = [1, 1]} : vector<2x128xf32> to vector<2x32xf32>
    %236 = vector.extract_strided_slice %228 {offsets = [0, 64], sizes = [2, 32], strides = [1, 1]} : vector<2x128xf32> to vector<2x32xf32>
    %237 = math.tanh %236 : vector<2x32xf32>
    %238 = vector.extract_strided_slice %233 {offsets = [0, 32], sizes = [2, 32], strides = [1, 1]} : vector<2x128xf32> to vector<2x32xf32>
    %239 = arith.mulf %238, %216 : vector<2x32xf32>
    %240 = arith.mulf %234, %237 : vector<2x32xf32>
    %241 = arith.addf %239, %240 : vector<2x32xf32>
    %242 = math.tanh %241 : vector<2x32xf32>
    %243 = arith.mulf %235, %242 : vector<2x32xf32>
    %244 = vector.extract_strided_slice %243 {offsets = [0, 0], sizes = [1, 32], strides = [1, 1]} : vector<2x32xf32> to vector<1x32xf32>
    %c6_88 = arith.constant 6 : index
    %c0_89 = arith.constant 0 : index
    %245 = vector.load %arg5[%c6_88, %c0_89] : memref<16x32xf32, #tpu.memory_space<vmem>>, vector<1x32xf32>
    tpu.vector_store %arg5[%c6_88, %c0_89], %244 {strides = array<i32>} : memref<16x32xf32, #tpu.memory_space<vmem>>, vector<1x32xf32>,
    %246 = vector.extract_strided_slice %243 {offsets = [1, 0], sizes = [1, 32], strides = [1, 1]} : vector<2x32xf32> to vector<1x32xf32>
    %c14_90 = arith.constant 14 : index
    %c0_91 = arith.constant 0 : index
    %247 = vector.load %arg5[%c14_90, %c0_91] : memref<16x32xf32, #tpu.memory_space<vmem>>, vector<1x32xf32>
    tpu.vector_store %arg5[%c14_90, %c0_91], %246 {strides = array<i32>} : memref<16x32xf32, #tpu.memory_space<vmem>>, vector<1x32xf32>,
    %c7 = arith.constant 7 : index
    %c0_92 = arith.constant 0 : index
    %248 = vector.load %arg4[%c7, %c0_92] : memref<16x128xf32, #tpu.memory_space<vmem>>, vector<1x128xf32>
    %c15 = arith.constant 15 : index
    %c0_93 = arith.constant 0 : index
    %249 = vector.load %arg4[%c15, %c0_93] : memref<16x128xf32, #tpu.memory_space<vmem>>, vector<1x128xf32>
    %250 = tpu.concatenate %248, %249 in 0 : vector<1x128xf32>, vector<1x128xf32> -> vector<2x128xf32>
    %251 = arith.truncf %243 : vector<2x32xf32> to vector<2x32xbf16>
    %cst_94 = arith.constant dense<0.000000e+00> : vector<2x128xf32>
    %252 = tpu.matmul %251, %4, %cst_94 {dimension_numbers = #tpu.dot_dimension_numbers<[1], [0], [0], [1], [0, 0, 1, 1], [], []>} : vector<2x32xbf16>, vector<32x128xbf16>, vector<2x128xf32> -> vector<2x128xf32>
    %253 = arith.addf %250, %252 : vector<2x128xf32>
    %254 = arith.negf %253 : vector<2x128xf32>
    %255 = math.exp %254 : vector<2x128xf32>
    %cst_95 = arith.constant 1.000000e+00 : f32
    %256 = vector.broadcast %cst_95 : f32 to vector<2x128xf32>
    %257 = arith.addf %256, %255 : vector<2x128xf32>
    %258 = arith.divf %256, %257 : vector<2x128xf32>
    %259 = vector.extract_strided_slice %258 {offsets = [0, 0], sizes = [2, 32], strides = [1, 1]} : vector<2x128xf32> to vector<2x32xf32>
    %260 = vector.extract_strided_slice %258 {offsets = [0, 96], sizes = [2, 32], strides = [1, 1]} : vector<2x128xf32> to vector<2x32xf32>
    %261 = vector.extract_strided_slice %253 {offsets = [0, 64], sizes = [2, 32], strides = [1, 1]} : vector<2x128xf32> to vector<2x32xf32>
    %262 = math.tanh %261 : vector<2x32xf32>
    %263 = vector.extract_strided_slice %258 {offsets = [0, 32], sizes = [2, 32], strides = [1, 1]} : vector<2x128xf32> to vector<2x32xf32>
    %264 = arith.mulf %263, %241 : vector<2x32xf32>
    %265 = arith.mulf %259, %262 : vector<2x32xf32>
    %266 = arith.addf %264, %265 : vector<2x32xf32>
    %267 = math.tanh %266 : vector<2x32xf32>
    %268 = arith.mulf %260, %267 : vector<2x32xf32>
    %269 = vector.extract_strided_slice %268 {offsets = [0, 0], sizes = [1, 32], strides = [1, 1]} : vector<2x32xf32> to vector<1x32xf32>
    %c7_96 = arith.constant 7 : index
    %c0_97 = arith.constant 0 : index
    %270 = vector.load %arg5[%c7_96, %c0_97] : memref<16x32xf32, #tpu.memory_space<vmem>>, vector<1x32xf32>
    tpu.vector_store %arg5[%c7_96, %c0_97], %269 {strides = array<i32>} : memref<16x32xf32, #tpu.memory_space<vmem>>, vector<1x32xf32>,
    %271 = vector.extract_strided_slice %268 {offsets = [1, 0], sizes = [1, 32], strides = [1, 1]} : vector<2x32xf32> to vector<1x32xf32>
    %c15_98 = arith.constant 15 : index
    %c0_99 = arith.constant 0 : index
    %272 = vector.load %arg5[%c15_98, %c0_99] : memref<16x32xf32, #tpu.memory_space<vmem>>, vector<1x32xf32>
    tpu.vector_store %arg5[%c15_98, %c0_99], %271 {strides = array<i32>} : memref<16x32xf32, #tpu.memory_space<vmem>>, vector<1x32xf32>,
    %c0_100 = arith.constant 0 : index
    %c0_101 = arith.constant 0 : index
    %273 = vector.load %arg5[%c0_100, %c0_101] : memref<16x32xf32, #tpu.memory_space<vmem>>, vector<16x32xf32>
    %274 = arith.truncf %273 : vector<16x32xf32> to vector<16x32xbf16>
    %cst_102 = arith.constant dense<0.000000e+00> : vector<16x32xf32>
    %275 = tpu.matmul %274, %5, %cst_102 {dimension_numbers = #tpu.dot_dimension_numbers<[1], [0], [0], [1], [0, 0, 1, 1], [], []>} : vector<16x32xbf16>, vector<32x32xbf16>, vector<16x32xf32> -> vector<16x32xf32>
    %276 = vector.broadcast %16 : vector<1x32xf32> to vector<16x32xf32>
    %277 = arith.addf %275, %276 : vector<16x32xf32>
    %278 = arith.truncf %268 : vector<2x32xf32> to vector<2x32xbf16>
    %cst_103 = arith.constant dense<0.000000e+00> : vector<2x32xf32>
    %279 = tpu.matmul %278, %6, %cst_103 {dimension_numbers = #tpu.dot_dimension_numbers<[1], [0], [0], [1], [0, 0, 1, 1], [], []>} : vector<2x32xbf16>, vector<32x32xbf16>, vector<2x32xf32> -> vector<2x32xf32>
    %280 = vector.broadcast %17 : vector<1x32xf32> to vector<2x32xf32>
    %281 = arith.addf %279, %280 : vector<2x32xf32>
    %282 = vector.extract_strided_slice %281 {offsets = [0, 0], sizes = [1, 32], strides = [1, 1]} : vector<2x32xf32> to vector<1x32xf32>
    %283 = vector.shape_cast %282 : vector<1x32xf32> to vector<1x32xf32>
    %284 = vector.broadcast %283 : vector<1x32xf32> to vector<8x32xf32>
    %285 = vector.extract_strided_slice %281 {offsets = [1, 0], sizes = [1, 32], strides = [1, 1]} : vector<2x32xf32> to vector<1x32xf32>
    %286 = vector.shape_cast %285 : vector<1x32xf32> to vector<1x32xf32>
    %287 = vector.broadcast %286 : vector<1x32xf32> to vector<8x32xf32>
    %288 = tpu.concatenate %284, %287 in 0 : vector<8x32xf32>, vector<8x32xf32> -> vector<16x32xf32>
    %289 = arith.addf %277, %288 : vector<16x32xf32>
    %290 = math.tanh %289 : vector<16x32xf32>
    %291 = arith.truncf %290 : vector<16x32xf32> to vector<16x32xbf16>
    %cst_104 = arith.constant dense<0.000000e+00> : vector<16x8xf32>
    %292 = tpu.matmul %291, %7, %cst_104 {dimension_numbers = #tpu.dot_dimension_numbers<[1], [0], [0], [1], [0, 0, 1, 1], [], []>} : vector<16x32xbf16>, vector<32x8xbf16>, vector<16x8xf32> -> vector<16x8xf32>
    %293 = vector.broadcast %18 : vector<1x8xf32> to vector<16x8xf32>
    %294 = arith.addf %292, %293 : vector<16x8xf32>
    %295 = vector.extract_strided_slice %294 {offsets = [0, 0], sizes = [8, 8], strides = [1, 1]} : vector<16x8xf32> to vector<8x8xf32>
    %cst_105 = arith.constant dense<0xFF800000> : vector<8xf32>
    %296 = vector.multi_reduction <maximumf>, %295, %cst_105 [0] : vector<8x8xf32> to vector<8xf32>
    %297 = vector.shape_cast %296 : vector<8xf32> to vector<1x8xf32>
    %298 = vector.broadcast %297 : vector<1x8xf32> to vector<8x8xf32>
    %299 = arith.subf %295, %298 : vector<8x8xf32>
    %300 = math.exp %299 : vector<8x8xf32>
    %cst_106 = arith.constant dense<0.000000e+00> : vector<8xf32>
    %301 = vector.multi_reduction <add>, %300, %cst_106 [0] : vector<8x8xf32> to vector<8xf32>
    %302 = vector.shape_cast %301 : vector<8xf32> to vector<1x8xf32>
    %303 = tpu.reciprocal %302 : vector<1x8xf32> -> vector<1x8xf32>
    %304 = vector.broadcast %303 : vector<1x8xf32> to vector<8x8xf32>
    %305 = arith.mulf %300, %304 : vector<8x8xf32>
    %306 = vector.extract_strided_slice %273 {offsets = [0, 0], sizes = [8, 32], strides = [1, 1]} : vector<16x32xf32> to vector<8x32xf32>
    %307 = arith.truncf %306 : vector<8x32xf32> to vector<8x32xbf16>
    %308 = arith.truncf %305 : vector<8x8xf32> to vector<8x8xbf16>
    %cst_107 = arith.constant dense<0.000000e+00> : vector<8x32xf32>
    %309 = tpu.matmul %308, %307, %cst_107 {dimension_numbers = #tpu.dot_dimension_numbers<[0], [0], [1], [1], [0, 1, 1, 1], [], []>} : vector<8x8xbf16>, vector<8x32xbf16>, vector<8x32xf32> -> vector<8x32xf32>
    %310 = vector.extract_strided_slice %294 {offsets = [8, 0], sizes = [8, 8], strides = [1, 1]} : vector<16x8xf32> to vector<8x8xf32>
    %cst_108 = arith.constant dense<0xFF800000> : vector<8xf32>
    %311 = vector.multi_reduction <maximumf>, %310, %cst_108 [0] : vector<8x8xf32> to vector<8xf32>
    %312 = vector.shape_cast %311 : vector<8xf32> to vector<1x8xf32>
    %313 = vector.broadcast %312 : vector<1x8xf32> to vector<8x8xf32>
    %314 = arith.subf %310, %313 : vector<8x8xf32>
    %315 = math.exp %314 : vector<8x8xf32>
    %cst_109 = arith.constant dense<0.000000e+00> : vector<8xf32>
    %316 = vector.multi_reduction <add>, %315, %cst_109 [0] : vector<8x8xf32> to vector<8xf32>
    %317 = vector.shape_cast %316 : vector<8xf32> to vector<1x8xf32>
    %318 = tpu.reciprocal %317 : vector<1x8xf32> -> vector<1x8xf32>
    %319 = vector.broadcast %318 : vector<1x8xf32> to vector<8x8xf32>
    %320 = arith.mulf %315, %319 : vector<8x8xf32>
    %321 = vector.extract_strided_slice %273 {offsets = [8, 0], sizes = [8, 32], strides = [1, 1]} : vector<16x32xf32> to vector<8x32xf32>
    %322 = arith.truncf %321 : vector<8x32xf32> to vector<8x32xbf16>
    %323 = arith.truncf %320 : vector<8x8xf32> to vector<8x8xbf16>
    %cst_110 = arith.constant dense<0.000000e+00> : vector<8x32xf32>
    %324 = tpu.matmul %323, %322, %cst_110 {dimension_numbers = #tpu.dot_dimension_numbers<[0], [0], [1], [1], [0, 1, 1, 1], [], []>} : vector<8x8xbf16>, vector<8x32xbf16>, vector<8x32xf32> -> vector<8x32xf32>
    %325 = tpu.concatenate %309, %324 in 0 : vector<8x32xf32>, vector<8x32xf32> -> vector<16x32xf32>
    %326 = arith.addf %39, %325 : vector<16x32xf32>
    %cst_111 = arith.constant dense<0.000000e+00> : vector<16xf32>
    %327 = vector.multi_reduction <add>, %326, %cst_111 [1] : vector<16x32xf32> to vector<16xf32>
    %328 = vector.shape_cast %327 : vector<16xf32> to vector<16x1xf32>
    %329 = arith.mulf %326, %326 : vector<16x32xf32>
    %cst_112 = arith.constant dense<0.000000e+00> : vector<16xf32>
    %330 = vector.multi_reduction <add>, %329, %cst_112 [1] : vector<16x32xf32> to vector<16xf32>
    %331 = vector.shape_cast %330 : vector<16xf32> to vector<16x1xf32>
    %332 = vector.extract_strided_slice %328 {offsets = [0, 0], sizes = [8, 1], strides = [1, 1]} : vector<16x1xf32> to vector<8x1xf32>
    %333 = vector.extract_strided_slice %331 {offsets = [0, 0], sizes = [8, 1], strides = [1, 1]} : vector<16x1xf32> to vector<8x1xf32>
    %334 = vector.extract_strided_slice %328 {offsets = [8, 0], sizes = [8, 1], strides = [1, 1]} : vector<16x1xf32> to vector<8x1xf32>
    %335 = arith.addf %332, %334 : vector<8x1xf32>
    %336 = vector.extract_strided_slice %331 {offsets = [8, 0], sizes = [8, 1], strides = [1, 1]} : vector<16x1xf32> to vector<8x1xf32>
    %337 = arith.addf %333, %336 : vector<8x1xf32>
    %cst_113 = arith.constant 1.562500e-02 : f32
    %338 = vector.broadcast %cst_113 : f32 to vector<8x1xf32>
    %339 = arith.mulf %335, %338 : vector<8x1xf32>
    %cst_114 = arith.constant 1.562500e-02 : f32
    %340 = vector.broadcast %cst_114 : f32 to vector<8x1xf32>
    %341 = arith.mulf %337, %340 : vector<8x1xf32>
    %342 = arith.mulf %339, %339 : vector<8x1xf32>
    %343 = arith.subf %341, %342 : vector<8x1xf32>
    %cst_115 = arith.constant 0.000000e+00 : f32
    %344 = vector.broadcast %cst_115 : f32 to vector<8x1xf32>
    %345 = arith.maximumf %343, %344 : vector<8x1xf32>
    %cst_116 = arith.constant 9.99999974E-6 : f32
    %346 = vector.broadcast %cst_116 : f32 to vector<8x1xf32>
    %347 = arith.addf %345, %346 : vector<8x1xf32>
    %348 = math.rsqrt %347 : vector<8x1xf32>
    %349 = tpu.concatenate %339, %339 in 0 : vector<8x1xf32>, vector<8x1xf32> -> vector<16x1xf32>
    %350 = tpu.concatenate %348, %348 in 0 : vector<8x1xf32>, vector<8x1xf32> -> vector<16x1xf32>
    %351 = arith.mulf %350, %13 : vector<16x1xf32>
    %352 = vector.broadcast %349 : vector<16x1xf32> to vector<16x32xf32>
    %353 = arith.subf %326, %352 : vector<16x32xf32>
    %354 = vector.broadcast %351 : vector<16x1xf32> to vector<16x32xf32>
    %355 = arith.mulf %353, %354 : vector<16x32xf32>
    %356 = vector.broadcast %14 : vector<16x1xf32> to vector<16x32xf32>
    %357 = arith.addf %355, %356 : vector<16x32xf32>
    %c0_117 = arith.constant 0 : index
    %c0_118 = arith.constant 0 : index
    %358 = vector.load %arg3[%c0_117, %c0_118] : memref<16x64xf32, #tpu.memory_space<vmem>>, vector<16x32xf32>
    tpu.vector_store %arg3[%c0_117, %c0_118], %357 {strides = array<i32>} : memref<16x64xf32, #tpu.memory_space<vmem>>, vector<16x32xf32>,
    %c0_119 = arith.constant 0 : index
    %c32_120 = arith.constant 32 : index
    %359 = vector.load %arg3[%c0_119, %c32_120] : memref<16x64xf32, #tpu.memory_space<vmem>>, vector<16x32xf32>
    tpu.vector_store %arg3[%c0_119, %c32_120], %325 {strides = array<i32>} : memref<16x64xf32, #tpu.memory_space<vmem>>, vector<16x32xf32>,
    return
  }
}

</mosaic_0001>

<llo_original>
// kernel: model_forward.1
$region0: #{model_forward.1}
  #allocation0 [shape = 'u32[]', space=smem, size = 0x4, offset = 0x4, fixed_abs, tag = 'smem constant byte address 0x4 - core index']
  #allocation1 [shape = 'u32[144,128]{1,0:T(1,128)}', space=vmem, size = 0x12000, scoped, tag = 'internal scratch']
  #allocation2 [shape = 'f32[16,128]{1,0:T(8,128)}', space=vmem, size = 0x2000, scoped, tag = 'scratch operand']
  #allocation3 [shape = 'f32[16,32]{1,0:T(8,128)}', space=vmem, size = 0x2000, scoped, tag = 'scratch operand']
  %s0 = inlined_call_operand.hbm [shape: f32[16,32], index: 0, kind: input, shape index: {}]
  %s1 = inlined_call_operand.hbm [shape: bf16[224,128], index: 1, kind: input, shape index: {}]
  %s2 = inlined_call_operand.hbm [shape: f32[24,128], index: 2, kind: input, shape index: {}]
  %s3 = inlined_call_operand.vmem [shape: f32[16,64], index: 3, kind: output, shape index: {}]
  %s4 = sld [smem:[#allocation0]]
  $region34: #{model_forward.1} parent=0
    _
  %s6 = ssub.s32 1, %s4
  %s7 = scalar_select 0, %s6, %s4
  $region1: #{model_forward.1} parent=0
    #allocation4 [shape = 'u8[8192]{0}', space=vmem, size = 0x2000, scoped, tag = 'input window, operand 0, single buffered']
    #allocation5 [shape = 's32[1]{0}', space=sflag, size = 0x4, scoped, tag = 'scoped memory for model_forward.1']
    #allocation6 [shape = 'u8[57344]{0}', space=vmem, size = 0xe000, scoped, tag = 'input window, operand 1, single buffered']
    #allocation7 [shape = 's32[1]{0}', space=sflag, size = 0x4, scoped, tag = 'scoped memory for model_forward.1']
    #allocation8 [shape = 'u8[12288]{0}', space=vmem, size = 0x3000, scoped, tag = 'input window, operand 2, single buffered']
    %8 = vsyncpa [#allocation5], 0
    %9 = vsyncpa [#allocation7], 0
    // Predicated region
    $region2: #{model_forward.1} parent=1 // pred_check
      _
    $region3: #{model_forward.1} parent=1 // pred_check_branch
      %11 = sbr.rel (0) target = $region5
    $region4: #{model_forward.1} parent=1 // pred_region
      %s13 = ssub.s32 256, 256
      %14 = vsyncadd [#allocation5], %s13
      %s15 = sshll.u32 [#allocation4], 4
      %s16 = int_to_ptr.vmem [resolvable:$true] %s15
      %21 = dma.hbm_to_vmem [thread:$0]  %s0, 256, %s16, [#allocation5], 128, 128, 8
    $region5: #{model_forward.1} parent=1 // pred_fallthru
      _
    // Predicated region
    $region6: #{model_forward.1} parent=1 // pred_check
      _
    $region7: #{model_forward.1} parent=1 // pred_check_branch
      %23 = sbr.rel (0) target = $region9
    $region8: #{model_forward.1} parent=1 // pred_region
      %s25 = ssub.s32 1792, 1792
      %26 = vsyncadd [#allocation7], %s25
      %s27 = sshll.u32 [#allocation6], 4
      %s28 = int_to_ptr.vmem [resolvable:$true] %s27
      %33 = dma.hbm_to_vmem [thread:$0]  %s1, 1792, %s28, [#allocation7], 64, 64, 4
    $region9: #{model_forward.1} parent=1 // pred_fallthru
      _
    // Predicated region
    $region10: #{model_forward.1} parent=1 // pred_check
      _
    $region11: #{model_forward.1} parent=1 // pred_check_branch
      %35 = sbr.rel (0) target = $region13
    $region12: #{model_forward.1} parent=1 // pred_region
      %s37 = ssub.s32 384, 384
      %38 = vsyncadd [#allocation7], %s37
      %s39 = sshll.u32 [#allocation8], 4
      %s40 = int_to_ptr.vmem [resolvable:$true] %s39
      %45 = dma.hbm_to_vmem [thread:$0]  %s2, 384, %s40, [#allocation7], 128, 128, 8
    $region13: #{model_forward.1} parent=1 // pred_fallthru
      _
    // Predicated region
    $region14: #{model_forward.1} parent=1 // pred_check
      _
    $region15: #{model_forward.1} parent=1 // pred_check_branch
      %47 = sbr.rel (0) target = $region17
    $region16: #{model_forward.1} parent=1 // pred_region
      %48 = dma.done [#allocation5], 256
    $region17: #{model_forward.1} parent=1 // pred_fallthru
      _
    // Predicated region
    $region18: #{model_forward.1} parent=1 // pred_check
      _
    $region19: #{model_forward.1} parent=1 // pred_check_branch
      %50 = sbr.rel (0) target = $region21
    $region20: #{model_forward.1} parent=1 // pred_region
      %51 = dma.done [#allocation7], 1792
    $region21: #{model_forward.1} parent=1 // pred_fallthru
      _
    // Predicated region
    $region22: #{model_forward.1} parent=1 // pred_check
      _
    $region23: #{model_forward.1} parent=1 // pred_check_branch
      %53 = sbr.rel (0) target = $region25
    $region24: #{model_forward.1} parent=1 // pred_region
      %54 = dma.done [#allocation7], 384
    $region25: #{model_forward.1} parent=1 // pred_fallthru
      _
    %v56 = vld [vmem:[#allocation6] sm:$0xf]
    %v57 = vld [vmem:[#allocation6 + $0x4] sm:$0xf]
    %v58 = vld [vmem:[#allocation6 + $0x8] sm:$0xf]
    %v59 = vld [vmem:[#allocation6 + $0xc] sm:$0xf]
    %v60 = vld [vmem:[#allocation6 + $0x10] sm:$0xf]
    %v61 = vld [vmem:[#allocation6 + $0x14] sm:$0xf]
    %v62 = vld [vmem:[#allocation6 + $0x18] sm:$0xf]
    %v63 = vld [vmem:[#allocation6 + $0x1c] sm:$0xf]
    %v64 = vld [vmem:[#allocation6 + $0x20] sm:$0xf]
    %v65 = vld [vmem:[#allocation6 + $0x24] sm:$0xf]
    %v66 = vld [vmem:[#allocation6 + $0x28] sm:$0xf]
    %v67 = vld [vmem:[#allocation6 + $0x2c] sm:$0xf]
    %v68 = vld [vmem:[#allocation6 + $0x30] sm:$0xf]
    %v69 = vld [vmem:[#allocation6 + $0x34] sm:$0xf]
    %v70 = vld [vmem:[#allocation6 + $0x38] sm:$0xf]
    %v71 = vld [vmem:[#allocation6 + $0x3c] sm:$0xf]
    %v72 = vld [vmem:[#allocation6 + $0x40] sm:$0xf]
    %v73 = vld [vmem:[#allocation6 + $0x44] sm:$0xf]
    %v74 = vld [vmem:[#allocation6 + $0x48] sm:$0xf]
    %v75 = vld [vmem:[#allocation6 + $0x4c] sm:$0xf]
    %v76 = vld [vmem:[#allocation6 + $0x50] sm:$0xf]
    %v77 = vld [vmem:[#allocation6 + $0x54] sm:$0xf]
    %v78 = vld [vmem:[#allocation6 + $0x58] sm:$0xf]
    %v79 = vld [vmem:[#allocation6 + $0x5c] sm:$0xf]
    %v80 = vld [vmem:[#allocation6 + $0x60] sm:$0xf]
    %v81 = vld [vmem:[#allocation6 + $0x64] sm:$0xf]
    %v82 = vld [vmem:[#allocation6 + $0x68] sm:$0xf]
    %v83 = vld [vmem:[#allocation6 + $0x6c] sm:$0xf]
    %v84 = vld [vmem:[#allocation8] sm:$0xff]
    %v85 = vld [vmem:[#allocation8 + $0x8] sm:$0xff]
    %v86 = vld [vmem:[#allocation8 + $0x10] sm:$0x1]
    %v87 = vld [vmem:[#allocation8 + $0x11] sm:$0x1]
    %v88 = vld [vmem:[#allocation8 + $0x12] sm:$0x1]
    %v89 = vld [vmem:[#allocation8 + $0x13] sm:$0x1]
    %v90 = vld [vmem:[#allocation4] sm:$0xff]
    %v91 = vld [vmem:[#allocation4 + $0x8] sm:$0xff]
    %v92 = vpack.c.bf16 %v91, %v90
    %v97 = vunpack.c.l.b16 %v56
    %v98 = vunpack.c.l.b16 %v57
    %v99 = vunpack.c.l.b16 %v58
    %v100 = vunpack.c.l.b16 %v59
    %v101 = vpack.c.b16 %v98, %v97
    %v102 = vpack.c.b16 %v100, %v99
    %vm105 = vcmask 261120
    %v107 = vsel %vm105, %v92, 0
    %109 = vmatprep.subr.bf16.mxu0 0
    %110 = vmatpush1.bf16.msra.mxu0 0
    %111 = vmatprep.subr.bf16.mxu0 0
    %112 = vmatpush1.bf16.msra.mxu0 0
    %113 = vmatprep.subr.bf16.mxu0 0
    %114 = vmatpush1.bf16.msra.mxu0 0
    %115 = vmatprep.subr.bf16.mxu0 0
    %116 = vmatpush1.bf16.msra.mxu0 0
    %117 = vmatprep.subr.bf16.mxu0 0
    %118 = vmatpush1.bf16.msra.mxu0 0
    %119 = vmatprep.subr.bf16.mxu0 0
    %120 = vmatpush1.bf16.msra.mxu0 0
    %121 = vmatprep.subr.bf16.mxu0 0
    %122 = vmatpush1.bf16.msra.mxu0 %v102
    %123 = vmatprep.subr.bf16.mxu0 0
    %124 = vmatpush1.bf16.msra.mxu0 %v101
    %125 = vmatprep.subr.bf16.mxu0 0
    %126 = vmatpush2.bf16.msra.mxu0 0
    %127 = vmatprep.subr.bf16.mxu0 0
    %128 = vmatpush2.bf16.msra.mxu0 0
    %129 = vmatprep.subr.bf16.mxu0 0
    %130 = vmatpush2.bf16.msra.mxu0 0
    %131 = vmatprep.subr.bf16.mxu0 0
    %132 = vmatpush2.bf16.msra.mxu0 0
    %133 = vmatprep.subr.bf16.mxu0 0
    %134 = vmatpush2.bf16.msra.mxu0 0
    %135 = vmatprep.subr.bf16.mxu0 0
    %136 = vmatpush2.bf16.msra.mxu0 0
    %137 = vmatprep.subr.bf16.mxu0 0
    %138 = vmatpush2.bf16.msra.mxu0 0
    %139 = vmatprep.subr.bf16.mxu0 0
    %140 = vmatpush2.bf16.msra.mxu0 0
    %141 = vmatprep.mubr.bf16.mxu0 0
    %142 = vmatmul.mubr.bf16.gmra.mxu0 %v107
    %v143 = vpop.f32.mrf.mxu0
    %v144 = vadd.f32 0.0, %v143
    %v145 = vpop.f32.mrf.mxu0
    %v146 = vpop.f32.mrf.mxu0
    %v147 = vadd.f32 0.0, %v146
    %v148 = vpop.f32.mrf.mxu0
    %149 = vdwg.mxu0
    %v150 = vpack.c.bf16 %v147, %v144
    %152 = vrot.lane.b32.xlu0 %v150, 96
    %v153 = vpop.permute.xlu0 %152
    %156 = vset.pattern.permute.xlu0 32
    %157 = vperm.xlu0 %156, %v84
    %v158 = vpop.permute.xlu0 %157
    %161 = vset.pattern.permute.xlu0 32
    %162 = vperm.xlu0 %161, %v85
    %v163 = vpop.permute.xlu0 %162
    %v167 = vunpack.c.l.b16 %v60
    %v168 = vunpack.c.l.b16 %v61
    %v169 = vpack.c.b16 %v168, %v167
    %vm170 = vcmask 392192
    %v172 = vsel %vm170, %v169, 0
    %174 = vmatprep.subr.bf16.mxu0 0
    %175 = vmatpush1.bf16.msra.mxu0 0
    %176 = vmatprep.subr.bf16.mxu0 0
    %177 = vmatpush1.bf16.msra.mxu0 0
    %178 = vmatprep.subr.bf16.mxu0 0
    %179 = vmatpush1.bf16.msra.mxu0 0
    %180 = vmatprep.subr.bf16.mxu0 0
    %181 = vmatpush1.bf16.msra.mxu0 0
    %182 = vmatprep.subr.bf16.mxu0 0
    %183 = vmatpush1.bf16.msra.mxu0 0
    %184 = vmatprep.subr.bf16.mxu0 0
    %185 = vmatpush1.bf16.msra.mxu0 %v153
    %186 = vmatprep.subr.bf16.mxu0 0
    %187 = vmatpush1.bf16.msra.mxu0 %v92
    %188 = vmatprep.subr.bf16.mxu0 0
    %189 = vmatpush1.bf16.msra.mxu0 %v150
    %190 = vmatprep.subr.bf16.mxu0 0
    %191 = vmatpush2.bf16.msra.mxu0 0
    %192 = vmatprep.subr.bf16.mxu0 0
    %193 = vmatpush2.bf16.msra.mxu0 0
    %194 = vmatprep.subr.bf16.mxu0 0
    %195 = vmatpush2.bf16.msra.mxu0 0
    %196 = vmatprep.subr.bf16.mxu0 0
    %197 = vmatpush2.bf16.msra.mxu0 0
    %198 = vmatprep.subr.bf16.mxu0 0
    %199 = vmatpush2.bf16.msra.mxu0 0
    %200 = vmatprep.subr.bf16.mxu0 0
    %201 = vmatpush2.bf16.msra.mxu0 0
    %202 = vmatprep.subr.bf16.mxu0 0
    %203 = vmatpush2.bf16.msra.mxu0 0
    %204 = vmatprep.subr.bf16.mxu0 0
    %205 = vmatpush2.bf16.msra.mxu0 0
    %206 = vmatprep.mubr.bf16.mxu0 0
    %207 = vmatmul.mubr.bf16.gmra.mxu0 %v172
    %v208 = vpop.f32.mrf.mxu0
    %v209 = vadd.f32 %v158, %v208
    %v210 = vpop.f32.mrf.mxu0
    %v211 = vpop.f32.mrf.mxu0
    %v212 = vadd.f32 %v163, %v211
    %v213 = vpop.f32.mrf.mxu0
    %214 = vdwg.mxu0
    %v215 = vpack.c.bf16 %v212, %v209
    %v217 = vsel %vm105, %v215, 0
    %219 = vmatprep.subr.bf16.mxu0 0
    %220 = vmatpush1.bf16.msra.mxu0 0
    %221 = vmatprep.subr.bf16.mxu0 0
    %222 = vmatpush1.bf16.msra.mxu0 0
    %223 = vmatprep.subr.bf16.mxu0 0
    %224 = vmatpush1.bf16.msra.mxu0 0
    %225 = vmatprep.subr.bf16.mxu0 0
    %226 = vmatpush1.bf16.msra.mxu0 0
    %227 = vmatprep.subr.bf16.mxu0 0
    %228 = vmatpush1.bf16.msra.mxu0 0
    %229 = vmatprep.subr.bf16.mxu0 0
    %230 = vmatpush1.bf16.msra.mxu0 0
    %231 = vmatprep.subr.bf16.mxu0 0
    %232 = vmatpush1.bf16.msra.mxu0 %v102
    %233 = vmatprep.subr.bf16.mxu0 0
    %234 = vmatpush1.bf16.msra.mxu0 %v101
    %235 = vmatprep.subr.bf16.mxu0 0
    %236 = vmatpush2.bf16.msra.mxu0 0
    %237 = vmatprep.subr.bf16.mxu0 0
    %238 = vmatpush2.bf16.msra.mxu0 0
    %239 = vmatprep.subr.bf16.mxu0 0
    %240 = vmatpush2.bf16.msra.mxu0 0
    %241 = vmatprep.subr.bf16.mxu0 0
    %242 = vmatpush2.bf16.msra.mxu0 0
    %243 = vmatprep.subr.bf16.mxu0 0
    %244 = vmatpush2.bf16.msra.mxu0 0
    %245 = vmatprep.subr.bf16.mxu0 0
    %246 = vmatpush2.bf16.msra.mxu0 0
    %247 = vmatprep.subr.bf16.mxu0 0
    %248 = vmatpush2.bf16.msra.mxu0 0
    %249 = vmatprep.subr.bf16.mxu0 0
    %250 = vmatpush2.bf16.msra.mxu0 0
    %251 = vmatprep.mubr.bf16.mxu0 0
    %252 = vmatmul.mubr.bf16.gmra.mxu0 %v217
    %v253 = vpop.f32.mrf.mxu0
    %v254 = vadd.f32 0.0, %v253
    %v255 = vpop.f32.mrf.mxu0
    %v256 = vpop.f32.mrf.mxu0
    %v257 = vadd.f32 0.0, %v256
    %v258 = vpop.f32.mrf.mxu0
    %259 = vdwg.mxu0
    %v260 = vpack.c.bf16 %v257, %v254
    %262 = vrot.lane.b32.xlu0 %v260, 96
    %v263 = vpop.permute.xlu0 %262
    %265 = vset.pattern.permute.xlu0 33
    %266 = vperm.xlu0 %265, %v84
    %v267 = vpop.permute.xlu0 %266
    %269 = vset.pattern.permute.xlu0 33
    %270 = vperm.xlu0 %269, %v85
    %v271 = vpop.permute.xlu0 %270
    %v275 = vunpack.c.l.b16 %v62
    %v276 = vunpack.c.l.b16 %v63
    %v277 = vpack.c.b16 %v276, %v275
    %v279 = vsel %vm170, %v277, 0
    %281 = vmatprep.subr.bf16.mxu0 0
    %282 = vmatpush1.bf16.msra.mxu0 0
    %283 = vmatprep.subr.bf16.mxu0 0
    %284 = vmatpush1.bf16.msra.mxu0 0
    %285 = vmatprep.subr.bf16.mxu0 0
    %286 = vmatpush1.bf16.msra.mxu0 0
    %287 = vmatprep.subr.bf16.mxu0 0
    %288 = vmatpush1.bf16.msra.mxu0 0
    %289 = vmatprep.subr.bf16.mxu0 0
    %290 = vmatpush1.bf16.msra.mxu0 0
    %291 = vmatprep.subr.bf16.mxu0 0
    %292 = vmatpush1.bf16.msra.mxu0 %v263
    %293 = vmatprep.subr.bf16.mxu0 0
    %294 = vmatpush1.bf16.msra.mxu0 %v215
    %295 = vmatprep.subr.bf16.mxu0 0
    %296 = vmatpush1.bf16.msra.mxu0 %v260
    %297 = vmatprep.subr.bf16.mxu0 0
    %298 = vmatpush2.bf16.msra.mxu0 0
    %299 = vmatprep.subr.bf16.mxu0 0
    %300 = vmatpush2.bf16.msra.mxu0 0
    %301 = vmatprep.subr.bf16.mxu0 0
    %302 = vmatpush2.bf16.msra.mxu0 0
    %303 = vmatprep.subr.bf16.mxu0 0
    %304 = vmatpush2.bf16.msra.mxu0 0
    %305 = vmatprep.subr.bf16.mxu0 0
    %306 = vmatpush2.bf16.msra.mxu0 0
    %307 = vmatprep.subr.bf16.mxu0 0
    %308 = vmatpush2.bf16.msra.mxu0 0
    %309 = vmatprep.subr.bf16.mxu0 0
    %310 = vmatpush2.bf16.msra.mxu0 0
    %311 = vmatprep.subr.bf16.mxu0 0
    %312 = vmatpush2.bf16.msra.mxu0 0
    %313 = vmatprep.mubr.bf16.mxu0 0
    %314 = vmatmul.mubr.bf16.gmra.mxu0 %v279
    %v315 = vpop.f32.mrf.mxu0
    %v316 = vadd.f32 %v267, %v315
    %v317 = vpop.f32.mrf.mxu0
    %v318 = vpop.f32.mrf.mxu0
    %v319 = vadd.f32 %v271, %v318
    %v320 = vpop.f32.mrf.mxu0
    %321 = vdwg.mxu0
    %v322 = vmul.f32 %v90, 5.656854
    %v323 = vmul.f32 %v91, 5.656854
    %v324 = vadd.f32 %v322, %v84
    %v325 = vadd.f32 %v323, %v85
    %v326 = vsel %vm105, %v324, 0.0
    %327 = vadd.xlane.f32.xlu0 %v326
    %v328 = vpop.xlane.xlu0 %327
    %v329 = vsel %vm105, %v325, 0.0
    %330 = vadd.xlane.f32.xlu0 %v329
    %v331 = vpop.xlane.xlu0 %330
    %v332 = vmul.f32 %v324, %v324
    %v333 = vmul.f32 %v325, %v325
    %v334 = vsel %vm105, %v332, 0.0
    %335 = vadd.xlane.f32.xlu0 %v334
    %v336 = vpop.xlane.xlu0 %335
    %v337 = vsel %vm105, %v333, 0.0
    %338 = vadd.xlane.f32.xlu0 %v337
    %v339 = vpop.xlane.xlu0 %338
    %v340 = vadd.f32 %v328, %v331
    %v341 = vadd.f32 %v336, %v339
    %v342 = vmul.f32 %v340, 0.015625
    %v343 = vmul.f32 %v341, 0.015625
    %v344 = vmul.f32 %v342, %v342
    %v345 = vsub.f32 %v343, %v344
    %v346 = vmax.f32 %v345, 0.0
    %v347 = vadd.f32 %v346, 1e-05
    %v348 = vrsqrt.pop %v347
    %349 = vrot.lane.b32.xlu0 %v84, 94
    %v350 = vpop.permute.xlu0 %349
    %351 = vrot.lane.b32.xlu0 %v85, 94
    %v352 = vpop.permute.xlu0 %351
    %v355 = vmul.f32 %v348, %v350
    %v356 = vmul.f32 %v348, %v352
    %358 = vset.pattern.permute.xlu0 0
    %359 = vperm.xlu0 %358, %v342
    %v360 = vpop.permute.xlu0 %359
    %v362 = vsub.f32 %v324, %v360
    %v363 = vsub.f32 %v325, %v360
    %365 = vset.pattern.permute.xlu0 0
    %366 = vperm.xlu0 %365, %v355
    %v367 = vpop.permute.xlu0 %366
    %370 = vset.pattern.permute.xlu0 0
    %371 = vperm.xlu0 %370, %v356
    %v372 = vpop.permute.xlu0 %371
    %v374 = vmul.f32 %v362, %v367
    %v375 = vmul.f32 %v363, %v372
    %376 = vset.pattern.permute.xlu0 35
    %377 = vperm.xlu0 %376, %v84
    %v378 = vpop.permute.xlu0 %377
    %380 = vset.pattern.permute.xlu0 35
    %381 = vperm.xlu0 %380, %v85
    %v382 = vpop.permute.xlu0 %381
    %v384 = vadd.f32 %v374, %v378
    %v385 = vadd.f32 %v375, %v382
    %v386 = vpack.c.bf16 %v385, %v384
    %v387 = vlaneseq
    %v388 = vshrl.u32 %v387, 7
    %v389 = vsub.s32 0, %v388
    %v390 = vrot.slane %v86, %v389
    %v395 = vunpack.c.l.b16 %v64
    %v396 = vunpack.c.l.b16 %v65
    %v397 = vunpack.c.l.b16 %v66
    %v398 = vunpack.c.l.b16 %v67
    %v399 = vpack.c.b16 %v396, %v395
    %v400 = vpack.c.b16 %v398, %v397
    %v404 = vsel %vm105, %v386, 0
    %406 = vmatprep.subr.bf16.mxu0 0
    %407 = vmatpush1.bf16.msra.mxu0 0
    %408 = vmatprep.subr.bf16.mxu0 0
    %409 = vmatpush1.bf16.msra.mxu0 0
    %410 = vmatprep.subr.bf16.mxu0 0
    %411 = vmatpush1.bf16.msra.mxu0 0
    %412 = vmatprep.subr.bf16.mxu0 0
    %413 = vmatpush1.bf16.msra.mxu0 0
    %414 = vmatprep.subr.bf16.mxu0 0
    %415 = vmatpush1.bf16.msra.mxu0 0
    %416 = vmatprep.subr.bf16.mxu0 0
    %417 = vmatpush1.bf16.msra.mxu0 0
    %418 = vmatprep.subr.bf16.mxu0 0
    %419 = vmatpush1.bf16.msra.mxu0 %v400
    %420 = vmatprep.subr.bf16.mxu0 0
    %421 = vmatpush1.bf16.msra.mxu0 %v399
    %422 = vmatprep.subr.bf16.mxu0 0
    %423 = vmatpush2.bf16.msra.mxu0 0
    %424 = vmatprep.subr.bf16.mxu0 0
    %425 = vmatpush2.bf16.msra.mxu0 0
    %426 = vmatprep.subr.bf16.mxu0 0
    %427 = vmatpush2.bf16.msra.mxu0 0
    %428 = vmatprep.subr.bf16.mxu0 0
    %429 = vmatpush2.bf16.msra.mxu0 0
    %430 = vmatprep.subr.bf16.mxu0 0
    %431 = vmatpush2.bf16.msra.mxu0 0
    %432 = vmatprep.subr.bf16.mxu0 0
    %433 = vmatpush2.bf16.msra.mxu0 0
    %434 = vmatprep.subr.bf16.mxu0 0
    %435 = vmatpush2.bf16.msra.mxu0 0
    %436 = vmatprep.subr.bf16.mxu0 0
    %437 = vmatpush2.bf16.msra.mxu0 0
    %438 = vmatprep.mubr.bf16.mxu0 0
    %439 = vmatmul.mubr.bf16.gmra.mxu0 %v404
    %v440 = vpop.f32.mrf.mxu0
    %v441 = vadd.f32 %v390, %v440
    %v442 = vpop.f32.mrf.mxu0
    %v443 = vpop.f32.mrf.mxu0
    %v444 = vadd.f32 %v390, %v443
    %v445 = vpop.f32.mrf.mxu0
    %446 = vdwg.mxu0
    %447 = vst [vmem:[#allocation2] sm:$0xff] %v441
    %448 = vst [vmem:[#allocation2 + $0x8] sm:$0xff] %v444
    %v449 = vld [vmem:[#allocation2] sm:$0x1]
    %v450 = vld [vmem:[#allocation2 + $0x8] sm:$0x1]
    %v452 = vrot.slane %v450, 7
    %vm454 = vcmask 1040384
    %v455 = vsel %vm454, %v449, %v452
    %v456 = vxor.u32 %v455, 2147483648
    %v457 = vmul.f32 %v456, 1.442695
    %v458 = vpow.pop %v457
    %v459 = vadd.f32 %v458, 1.0
    %v460 = vrcp.pop %v459
    %v461 = vmul.f32 1.0, %v460
    %v462 = vtanh.pop %v455
    %464 = vrot.lane.b32.xlu0 %v462, 64
    %v465 = vpop.permute.xlu0 %464
    %v467 = vmul.f32 %v461, %v465
    %v468 = vtanh.pop %v467
    %470 = vrot.lane.b32.xlu0 %v468, 96
    %v471 = vpop.permute.xlu0 %470
    %v473 = vmul.f32 %v461, %v471
    %475 = vrot.lane.b32.xlu0 %v473, 32
    %v476 = vpop.permute.xlu0 %475
    %vm478 = vcmask 253952
    %479 = vst.msk [vmem:[#allocation3] sm:$0x1] %vm478, %v476
    %vm480 = vcmask 254977
    %481 = vst.msk [vmem:[#allocation3 + $0x7] sm:$0x2] %vm480, %v476
    %v482 = vld [vmem:[#allocation2 + $0x1] sm:$0x1]
    %v483 = vld [vmem:[#allocation2 + $0x9] sm:$0x1]
    %v485 = vrot.slane %v483, 7
    %v487 = vsel %vm454, %v482, %v485
    %v488 = vpack.c.bf16 %v473, %v473
    %490 = vrot.lane.b32.xlu0 %v488, 32
    %v491 = vpop.permute.xlu0 %490
    %v496 = vunpack.c.l.b16 %v68
    %v497 = vunpack.c.l.b16 %v69
    %v498 = vunpack.c.l.b16 %v70
    %v499 = vunpack.c.l.b16 %v71
    %v500 = vpack.c.b16 %v497, %v496
    %v501 = vpack.c.b16 %v499, %v498
    %v505 = vsel %vm105, %v491, 0
    %507 = vmatprep.subr.bf16.mxu0 0
    %508 = vmatpush1.bf16.msra.mxu0 0
    %509 = vmatprep.subr.bf16.mxu0 0
    %510 = vmatpush1.bf16.msra.mxu0 0
    %511 = vmatprep.subr.bf16.mxu0 0
    %512 = vmatpush1.bf16.msra.mxu0 0
    %513 = vmatprep.subr.bf16.mxu0 0
    %514 = vmatpush1.bf16.msra.mxu0 0
    %515 = vmatprep.subr.bf16.mxu0 0
    %516 = vmatpush1.bf16.msra.mxu0 0
    %517 = vmatprep.subr.bf16.mxu0 0
    %518 = vmatpush1.bf16.msra.mxu0 0
    %519 = vmatprep.subr.bf16.mxu0 0
    %520 = vmatpush1.bf16.msra.mxu0 %v501
    %521 = vmatprep.subr.bf16.mxu0 0
    %522 = vmatpush1.bf16.msra.mxu0 %v500
    %523 = vmatprep.subr.bf16.mxu0 0
    %524 = vmatpush2.bf16.msra.mxu0 0
    %525 = vmatprep.subr.bf16.mxu0 0
    %526 = vmatpush2.bf16.msra.mxu0 0
    %527 = vmatprep.subr.bf16.mxu0 0
    %528 = vmatpush2.bf16.msra.mxu0 0
    %529 = vmatprep.subr.bf16.mxu0 0
    %530 = vmatpush2.bf16.msra.mxu0 0
    %531 = vmatprep.subr.bf16.mxu0 0
    %532 = vmatpush2.bf16.msra.mxu0 0
    %533 = vmatprep.subr.bf16.mxu0 0
    %534 = vmatpush2.bf16.msra.mxu0 0
    %535 = vmatprep.subr.bf16.mxu0 0
    %536 = vmatpush2.bf16.msra.mxu0 0
    %537 = vmatprep.subr.bf16.mxu0 0
    %538 = vmatpush2.bf16.msra.mxu0 0
    %539 = vmatprep.mubr.bf16.mxu0 0
    %540 = vmatmul.mubr.bf16.gmra.mxu0 %v505
    %v541 = vpop.f32.mrf.mxu0
    %v542 = vadd.f32 0.0, %v541
    %v543 = vpop.f32.mrf.mxu0
    %v544 = vpop.f32.mrf.mxu0
    %v545 = vpop.f32.mrf.mxu0
    %546 = vdwg.mxu0
    %v547 = vadd.f32 %v487, %v542
    %v548 = vxor.u32 %v547, 2147483648
    %v549 = vmul.f32 %v548, 1.442695
    %v550 = vpow.pop %v549
    %v551 = vadd.f32 %v550, 1.0
    %v552 = vrcp.pop %v551
    %v553 = vmul.f32 1.0, %v552
    %v554 = vtanh.pop %v547
    %556 = vrot.lane.b32.xlu0 %v467, 32
    %v557 = vpop.permute.xlu0 %556
    %v559 = vmul.f32 %v553, %v557
    %561 = vrot.lane.b32.xlu0 %v554, 64
    %v562 = vpop.permute.xlu0 %561
    %v564 = vmul.f32 %v553, %v562
    %566 = vrot.lane.b32.xlu0 %v564, 32
    %v567 = vpop.permute.xlu0 %566
    %v569 = vadd.f32 %v559, %v567
    %v570 = vtanh.pop %v569
    %572 = vrot.lane.b32.xlu0 %v570, 64
    %v573 = vpop.permute.xlu0 %572
    %v575 = vmul.f32 %v553, %v573
    %577 = vrot.lane.b32.xlu0 %v575, 32
    %v578 = vpop.permute.xlu0 %577
    %580 = vst.msk [vmem:[#allocation3 + $0x1] sm:$0x1] %vm478, %v578
    %581 = vst.msk [vmem:[#allocation3 + $0x8] sm:$0x2] %vm480, %v578
    %v582 = vld [vmem:[#allocation2 + $0x2] sm:$0x1]
    %v583 = vld [vmem:[#allocation2 + $0xa] sm:$0x1]
    %v585 = vrot.slane %v583, 7
    %v587 = vsel %vm454, %v582, %v585
    %v588 = vpack.c.bf16 %v575, %v575
    %590 = vrot.lane.b32.xlu0 %v588, 32
    %v591 = vpop.permute.xlu0 %590
    %v593 = vsel %vm105, %v591, 0
    %595 = vmatprep.subr.bf16.mxu0 0
    %596 = vmatpush1.bf16.msra.mxu0 0
    %597 = vmatprep.subr.bf16.mxu0 0
    %598 = vmatpush1.bf16.msra.mxu0 0
    %599 = vmatprep.subr.bf16.mxu0 0
    %600 = vmatpush1.bf16.msra.mxu0 0
    %601 = vmatprep.subr.bf16.mxu0 0
    %602 = vmatpush1.bf16.msra.mxu0 0
    %603 = vmatprep.subr.bf16.mxu0 0
    %604 = vmatpush1.bf16.msra.mxu0 0
    %605 = vmatprep.subr.bf16.mxu0 0
    %606 = vmatpush1.bf16.msra.mxu0 0
    %607 = vmatprep.subr.bf16.mxu0 0
    %608 = vmatpush1.bf16.msra.mxu0 %v501
    %609 = vmatprep.subr.bf16.mxu0 0
    %610 = vmatpush1.bf16.msra.mxu0 %v500
    %611 = vmatprep.subr.bf16.mxu0 0
    %612 = vmatpush2.bf16.msra.mxu0 0
    %613 = vmatprep.subr.bf16.mxu0 0
    %614 = vmatpush2.bf16.msra.mxu0 0
    %615 = vmatprep.subr.bf16.mxu0 0
    %616 = vmatpush2.bf16.msra.mxu0 0
    %617 = vmatprep.subr.bf16.mxu0 0
    %618 = vmatpush2.bf16.msra.mxu0 0
    %619 = vmatprep.subr.bf16.mxu0 0
    %620 = vmatpush2.bf16.msra.mxu0 0
    %621 = vmatprep.subr.bf16.mxu0 0
    %622 = vmatpush2.bf16.msra.mxu0 0
    %623 = vmatprep.subr.bf16.mxu0 0
    %624 = vmatpush2.bf16.msra.mxu0 0
    %625 = vmatprep.subr.bf16.mxu0 0
    %626 = vmatpush2.bf16.msra.mxu0 0
    %627 = vmatprep.mubr.bf16.mxu0 0
    %628 = vmatmul.mubr.bf16.gmra.mxu0 %v593
    %v629 = vpop.f32.mrf.mxu0
    %v630 = vadd.f32 0.0, %v629
    %v631 = vpop.f32.mrf.mxu0
    %v632 = vpop.f32.mrf.mxu0
    %v633 = vpop.f32.mrf.mxu0
    %634 = vdwg.mxu0
    %v635 = vadd.f32 %v587, %v630
    %v636 = vxor.u32 %v635, 2147483648
    %v637 = vmul.f32 %v636, 1.442695
    %v638 = vpow.pop %v637
    %v639 = vadd.f32 %v638, 1.0
    %v640 = vrcp.pop %v639
    %v641 = vmul.f32 1.0, %v640
    %v642 = vtanh.pop %v635
    %v643 = vmul.f32 %v641, %v569
    %645 = vrot.lane.b32.xlu0 %v642, 64
    %v646 = vpop.permute.xlu0 %645
    %v648 = vmul.f32 %v641, %v646
    %650 = vrot.lane.b32.xlu0 %v648, 32
    %v651 = vpop.permute.xlu0 %650
    %v653 = vadd.f32 %v643, %v651
    %v654 = vtanh.pop %v653
    %656 = vrot.lane.b32.xlu0 %v654, 64
    %v657 = vpop.permute.xlu0 %656
    %v659 = vmul.f32 %v641, %v657
    %661 = vrot.lane.b32.xlu0 %v659, 32
    %v662 = vpop.permute.xlu0 %661
    %664 = vst.msk [vmem:[#allocation3 + $0x2] sm:$0x1] %vm478, %v662
    %665 = vst.msk [vmem:[#allocation3 + $0x9] sm:$0x2] %vm480, %v662
    %v666 = vld [vmem:[#allocation2 + $0x3] sm:$0x1]
    %v667 = vld [vmem:[#allocation2 + $0xb] sm:$0x1]
    %v669 = vrot.slane %v667, 7
    %v671 = vsel %vm454, %v666, %v669
    %v672 = vpack.c.bf16 %v659, %v659
    %674 = vrot.lane.b32.xlu0 %v672, 32
    %v675 = vpop.permute.xlu0 %674
    %v677 = vsel %vm105, %v675, 0
    %679 = vmatprep.subr.bf16.mxu0 0
    %680 = vmatpush1.bf16.msra.mxu0 0
    %681 = vmatprep.subr.bf16.mxu0 0
    %682 = vmatpush1.bf16.msra.mxu0 0
    %683 = vmatprep.subr.bf16.mxu0 0
    %684 = vmatpush1.bf16.msra.mxu0 0
    %685 = vmatprep.subr.bf16.mxu0 0
    %686 = vmatpush1.bf16.msra.mxu0 0
    %687 = vmatprep.subr.bf16.mxu0 0
    %688 = vmatpush1.bf16.msra.mxu0 0
    %689 = vmatprep.subr.bf16.mxu0 0
    %690 = vmatpush1.bf16.msra.mxu0 0
    %691 = vmatprep.subr.bf16.mxu0 0
    %692 = vmatpush1.bf16.msra.mxu0 %v501
    %693 = vmatprep.subr.bf16.mxu0 0
    %694 = vmatpush1.bf16.msra.mxu0 %v500
    %695 = vmatprep.subr.bf16.mxu0 0
    %696 = vmatpush2.bf16.msra.mxu0 0
    %697 = vmatprep.subr.bf16.mxu0 0
    %698 = vmatpush2.bf16.msra.mxu0 0
    %699 = vmatprep.subr.bf16.mxu0 0
    %700 = vmatpush2.bf16.msra.mxu0 0
    %701 = vmatprep.subr.bf16.mxu0 0
    %702 = vmatpush2.bf16.msra.mxu0 0
    %703 = vmatprep.subr.bf16.mxu0 0
    %704 = vmatpush2.bf16.msra.mxu0 0
    %705 = vmatprep.subr.bf16.mxu0 0
    %706 = vmatpush2.bf16.msra.mxu0 0
    %707 = vmatprep.subr.bf16.mxu0 0
    %708 = vmatpush2.bf16.msra.mxu0 0
    %709 = vmatprep.subr.bf16.mxu0 0
    %710 = vmatpush2.bf16.msra.mxu0 0
    %711 = vmatprep.mubr.bf16.mxu0 0
    %712 = vmatmul.mubr.bf16.gmra.mxu0 %v677
    %v713 = vpop.f32.mrf.mxu0
    %v714 = vadd.f32 0.0, %v713
    %v715 = vpop.f32.mrf.mxu0
    %v716 = vpop.f32.mrf.mxu0
    %v717 = vpop.f32.mrf.mxu0
    %718 = vdwg.mxu0
    %v719 = vadd.f32 %v671, %v714
    %v720 = vxor.u32 %v719, 2147483648
    %v721 = vmul.f32 %v720, 1.442695
    %v722 = vpow.pop %v721
    %v723 = vadd.f32 %v722, 1.0
    %v724 = vrcp.pop %v723
    %v725 = vmul.f32 1.0, %v724
    %v726 = vtanh.pop %v719
    %v727 = vmul.f32 %v725, %v653
    %729 = vrot.lane.b32.xlu0 %v726, 64
    %v730 = vpop.permute.xlu0 %729
    %v732 = vmul.f32 %v725, %v730
    %734 = vrot.lane.b32.xlu0 %v732, 32
    %v735 = vpop.permute.xlu0 %734
    %v737 = vadd.f32 %v727, %v735
    %v738 = vtanh.pop %v737
    %740 = vrot.lane.b32.xlu0 %v738, 64
    %v741 = vpop.permute.xlu0 %740
    %v743 = vmul.f32 %v725, %v741
    %745 = vrot.lane.b32.xlu0 %v743, 32
    %v746 = vpop.permute.xlu0 %745
    %748 = vst.msk [vmem:[#allocation3 + $0x3] sm:$0x1] %vm478, %v746
    %749 = vst.msk [vmem:[#allocation3 + $0xa] sm:$0x2] %vm480, %v746
    %v750 = vld [vmem:[#allocation2 + $0x4] sm:$0x1]
    %v751 = vld [vmem:[#allocation2 + $0xc] sm:$0x1]
    %v753 = vrot.slane %v751, 7
    %v755 = vsel %vm454, %v750, %v753
    %v756 = vpack.c.bf16 %v743, %v743
    %758 = vrot.lane.b32.xlu0 %v756, 32
    %v759 = vpop.permute.xlu0 %758
    %v761 = vsel %vm105, %v759, 0
    %763 = vmatprep.subr.bf16.mxu0 0
    %764 = vmatpush1.bf16.msra.mxu0 0
    %765 = vmatprep.subr.bf16.mxu0 0
    %766 = vmatpush1.bf16.msra.mxu0 0
    %767 = vmatprep.subr.bf16.mxu0 0
    %768 = vmatpush1.bf16.msra.mxu0 0
    %769 = vmatprep.subr.bf16.mxu0 0
    %770 = vmatpush1.bf16.msra.mxu0 0
    %771 = vmatprep.subr.bf16.mxu0 0
    %772 = vmatpush1.bf16.msra.mxu0 0
    %773 = vmatprep.subr.bf16.mxu0 0
    %774 = vmatpush1.bf16.msra.mxu0 0
    %775 = vmatprep.subr.bf16.mxu0 0
    %776 = vmatpush1.bf16.msra.mxu0 %v501
    %777 = vmatprep.subr.bf16.mxu0 0
    %778 = vmatpush1.bf16.msra.mxu0 %v500
    %779 = vmatprep.subr.bf16.mxu0 0
    %780 = vmatpush2.bf16.msra.mxu0 0
    %781 = vmatprep.subr.bf16.mxu0 0
    %782 = vmatpush2.bf16.msra.mxu0 0
    %783 = vmatprep.subr.bf16.mxu0 0
    %784 = vmatpush2.bf16.msra.mxu0 0
    %785 = vmatprep.subr.bf16.mxu0 0
    %786 = vmatpush2.bf16.msra.mxu0 0
    %787 = vmatprep.subr.bf16.mxu0 0
    %788 = vmatpush2.bf16.msra.mxu0 0
    %789 = vmatprep.subr.bf16.mxu0 0
    %790 = vmatpush2.bf16.msra.mxu0 0
    %791 = vmatprep.subr.bf16.mxu0 0
    %792 = vmatpush2.bf16.msra.mxu0 0
    %793 = vmatprep.subr.bf16.mxu0 0
    %794 = vmatpush2.bf16.msra.mxu0 0
    %795 = vmatprep.mubr.bf16.mxu0 0
    %796 = vmatmul.mubr.bf16.gmra.mxu0 %v761
    %v797 = vpop.f32.mrf.mxu0
    %v798 = vadd.f32 0.0, %v797
    %v799 = vpop.f32.mrf.mxu0
    %v800 = vpop.f32.mrf.mxu0
    %v801 = vpop.f32.mrf.mxu0
    %802 = vdwg.mxu0
    %v803 = vadd.f32 %v755, %v798
    %v804 = vxor.u32 %v803, 2147483648
    %v805 = vmul.f32 %v804, 1.442695
    %v806 = vpow.pop %v805
    %v807 = vadd.f32 %v806, 1.0
    %v808 = vrcp.pop %v807
    %v809 = vmul.f32 1.0, %v808
    %v810 = vtanh.pop %v803
    %v811 = vmul.f32 %v809, %v737
    %813 = vrot.lane.b32.xlu0 %v810, 64
    %v814 = vpop.permute.xlu0 %813
    %v816 = vmul.f32 %v809, %v814
    %818 = vrot.lane.b32.xlu0 %v816, 32
    %v819 = vpop.permute.xlu0 %818
    %v821 = vadd.f32 %v811, %v819
    %v822 = vtanh.pop %v821
    %824 = vrot.lane.b32.xlu0 %v822, 64
    %v825 = vpop.permute.xlu0 %824
    %v827 = vmul.f32 %v809, %v825
    %829 = vrot.lane.b32.xlu0 %v827, 32
    %v830 = vpop.permute.xlu0 %829
    %832 = vst.msk [vmem:[#allocation3 + $0x4] sm:$0x1] %vm478, %v830
    %833 = vst.msk [vmem:[#allocation3 + $0xb] sm:$0x2] %vm480, %v830
    %v834 = vld [vmem:[#allocation2 + $0x5] sm:$0x1]
    %v835 = vld [vmem:[#allocation2 + $0xd] sm:$0x1]
    %v837 = vrot.slane %v835, 7
    %v839 = vsel %vm454, %v834, %v837
    %v840 = vpack.c.bf16 %v827, %v827
    %842 = vrot.lane.b32.xlu0 %v840, 32
    %v843 = vpop.permute.xlu0 %842
    %v845 = vsel %vm105, %v843, 0
    %847 = vmatprep.subr.bf16.mxu0 0
    %848 = vmatpush1.bf16.msra.mxu0 0
    %849 = vmatprep.subr.bf16.mxu0 0
    %850 = vmatpush1.bf16.msra.mxu0 0
    %851 = vmatprep.subr.bf16.mxu0 0
    %852 = vmatpush1.bf16.msra.mxu0 0
    %853 = vmatprep.subr.bf16.mxu0 0
    %854 = vmatpush1.bf16.msra.mxu0 0
    %855 = vmatprep.subr.bf16.mxu0 0
    %856 = vmatpush1.bf16.msra.mxu0 0
    %857 = vmatprep.subr.bf16.mxu0 0
    %858 = vmatpush1.bf16.msra.mxu0 0
    %859 = vmatprep.subr.bf16.mxu0 0
    %860 = vmatpush1.bf16.msra.mxu0 %v501
    %861 = vmatprep.subr.bf16.mxu0 0
    %862 = vmatpush1.bf16.msra.mxu0 %v500
    %863 = vmatprep.subr.bf16.mxu0 0
    %864 = vmatpush2.bf16.msra.mxu0 0
    %865 = vmatprep.subr.bf16.mxu0 0
    %866 = vmatpush2.bf16.msra.mxu0 0
    %867 = vmatprep.subr.bf16.mxu0 0
    %868 = vmatpush2.bf16.msra.mxu0 0
    %869 = vmatprep.subr.bf16.mxu0 0
    %870 = vmatpush2.bf16.msra.mxu0 0
    %871 = vmatprep.subr.bf16.mxu0 0
    %872 = vmatpush2.bf16.msra.mxu0 0
    %873 = vmatprep.subr.bf16.mxu0 0
    %874 = vmatpush2.bf16.msra.mxu0 0
    %875 = vmatprep.subr.bf16.mxu0 0
    %876 = vmatpush2.bf16.msra.mxu0 0
    %877 = vmatprep.subr.bf16.mxu0 0
    %878 = vmatpush2.bf16.msra.mxu0 0
    %879 = vmatprep.mubr.bf16.mxu0 0
    %880 = vmatmul.mubr.bf16.gmra.mxu0 %v845
    %v881 = vpop.f32.mrf.mxu0
    %v882 = vadd.f32 0.0, %v881
    %v883 = vpop.f32.mrf.mxu0
    %v884 = vpop.f32.mrf.mxu0
    %v885 = vpop.f32.mrf.mxu0
    %886 = vdwg.mxu0
    %v887 = vadd.f32 %v839, %v882
    %v888 = vxor.u32 %v887, 2147483648
    %v889 = vmul.f32 %v888, 1.442695
    %v890 = vpow.pop %v889
    %v891 = vadd.f32 %v890, 1.0
    %v892 = vrcp.pop %v891
    %v893 = vmul.f32 1.0, %v892
    %v894 = vtanh.pop %v887
    %v895 = vmul.f32 %v893, %v821
    %897 = vrot.lane.b32.xlu0 %v894, 64
    %v898 = vpop.permute.xlu0 %897
    %v900 = vmul.f32 %v893, %v898
    %902 = vrot.lane.b32.xlu0 %v900, 32
    %v903 = vpop.permute.xlu0 %902
    %v905 = vadd.f32 %v895, %v903
    %v906 = vtanh.pop %v905
    %908 = vrot.lane.b32.xlu0 %v906, 64
    %v909 = vpop.permute.xlu0 %908
    %v911 = vmul.f32 %v893, %v909
    %913 = vrot.lane.b32.xlu0 %v911, 32
    %v914 = vpop.permute.xlu0 %913
    %916 = vst.msk [vmem:[#allocation3 + $0x5] sm:$0x1] %vm478, %v914
    %917 = vst.msk [vmem:[#allocation3 + $0xc] sm:$0x2] %vm480, %v914
    %v918 = vld [vmem:[#allocation2 + $0x6] sm:$0x1]
    %v919 = vld [vmem:[#allocation2 + $0xe] sm:$0x1]
    %v921 = vrot.slane %v919, 7
    %v923 = vsel %vm454, %v918, %v921
    %v924 = vpack.c.bf16 %v911, %v911
    %926 = vrot.lane.b32.xlu0 %v924, 32
    %v927 = vpop.permute.xlu0 %926
    %v929 = vsel %vm105, %v927, 0
    %931 = vmatprep.subr.bf16.mxu0 0
    %932 = vmatpush1.bf16.msra.mxu0 0
    %933 = vmatprep.subr.bf16.mxu0 0
    %934 = vmatpush1.bf16.msra.mxu0 0
    %935 = vmatprep.subr.bf16.mxu0 0
    %936 = vmatpush1.bf16.msra.mxu0 0
    %937 = vmatprep.subr.bf16.mxu0 0
    %938 = vmatpush1.bf16.msra.mxu0 0
    %939 = vmatprep.subr.bf16.mxu0 0
    %940 = vmatpush1.bf16.msra.mxu0 0
    %941 = vmatprep.subr.bf16.mxu0 0
    %942 = vmatpush1.bf16.msra.mxu0 0
    %943 = vmatprep.subr.bf16.mxu0 0
    %944 = vmatpush1.bf16.msra.mxu0 %v501
    %945 = vmatprep.subr.bf16.mxu0 0
    %946 = vmatpush1.bf16.msra.mxu0 %v500
    %947 = vmatprep.subr.bf16.mxu0 0
    %948 = vmatpush2.bf16.msra.mxu0 0
    %949 = vmatprep.subr.bf16.mxu0 0
    %950 = vmatpush2.bf16.msra.mxu0 0
    %951 = vmatprep.subr.bf16.mxu0 0
    %952 = vmatpush2.bf16.msra.mxu0 0
    %953 = vmatprep.subr.bf16.mxu0 0
    %954 = vmatpush2.bf16.msra.mxu0 0
    %955 = vmatprep.subr.bf16.mxu0 0
    %956 = vmatpush2.bf16.msra.mxu0 0
    %957 = vmatprep.subr.bf16.mxu0 0
    %958 = vmatpush2.bf16.msra.mxu0 0
    %959 = vmatprep.subr.bf16.mxu0 0
    %960 = vmatpush2.bf16.msra.mxu0 0
    %961 = vmatprep.subr.bf16.mxu0 0
    %962 = vmatpush2.bf16.msra.mxu0 0
    %963 = vmatprep.mubr.bf16.mxu0 0
    %964 = vmatmul.mubr.bf16.gmra.mxu0 %v929
    %v965 = vpop.f32.mrf.mxu0
    %v966 = vadd.f32 0.0, %v965
    %v967 = vpop.f32.mrf.mxu0
    %v968 = vpop.f32.mrf.mxu0
    %v969 = vpop.f32.mrf.mxu0
    %970 = vdwg.mxu0
    %v971 = vadd.f32 %v923, %v966
    %v972 = vxor.u32 %v971, 2147483648
    %v973 = vmul.f32 %v972, 1.442695
    %v974 = vpow.pop %v973
    %v975 = vadd.f32 %v974, 1.0
    %v976 = vrcp.pop %v975
    %v977 = vmul.f32 1.0, %v976
    %v978 = vtanh.pop %v971
    %v979 = vmul.f32 %v977, %v905
    %981 = vrot.lane.b32.xlu0 %v978, 64
    %v982 = vpop.permute.xlu0 %981
    %v984 = vmul.f32 %v977, %v982
    %986 = vrot.lane.b32.xlu0 %v984, 32
    %v987 = vpop.permute.xlu0 %986
    %v989 = vadd.f32 %v979, %v987
    %v990 = vtanh.pop %v989
    %992 = vrot.lane.b32.xlu0 %v990, 64
    %v993 = vpop.permute.xlu0 %992
    %v995 = vmul.f32 %v977, %v993
    %997 = vrot.lane.b32.xlu0 %v995, 32
    %v998 = vpop.permute.xlu0 %997
    %1000 = vst.msk [vmem:[#allocation3 + $0x6] sm:$0x1] %vm478, %v998
    %1001 = vst.msk [vmem:[#allocation3 + $0xd] sm:$0x2] %vm480, %v998
    %v1002 = vld [vmem:[#allocation2 + $0x7] sm:$0x1]
    %v1003 = vld [vmem:[#allocation2 + $0xf] sm:$0x1]
    %v1005 = vrot.slane %v1003, 7
    %v1007 = vsel %vm454, %v1002, %v1005
    %v1008 = vpack.c.bf16 %v995, %v995
    %1010 = vrot.lane.b32.xlu0 %v1008, 32
    %v1011 = vpop.permute.xlu0 %1010
    %v1013 = vsel %vm105, %v1011, 0
    %1015 = vmatprep.subr.bf16.mxu0 0
    %1016 = vmatpush1.bf16.msra.mxu0 0
    %1017 = vmatprep.subr.bf16.mxu0 0
    %1018 = vmatpush1.bf16.msra.mxu0 0
    %1019 = vmatprep.subr.bf16.mxu0 0
    %1020 = vmatpush1.bf16.msra.mxu0 0
    %1021 = vmatprep.subr.bf16.mxu0 0
    %1022 = vmatpush1.bf16.msra.mxu0 0
    %1023 = vmatprep.subr.bf16.mxu0 0
    %1024 = vmatpush1.bf16.msra.mxu0 0
    %1025 = vmatprep.subr.bf16.mxu0 0
    %1026 = vmatpush1.bf16.msra.mxu0 0
    %1027 = vmatprep.subr.bf16.mxu0 0
    %1028 = vmatpush1.bf16.msra.mxu0 %v501
    %1029 = vmatprep.subr.bf16.mxu0 0
    %1030 = vmatpush1.bf16.msra.mxu0 %v500
    %1031 = vmatprep.subr.bf16.mxu0 0
    %1032 = vmatpush2.bf16.msra.mxu0 0
    %1033 = vmatprep.subr.bf16.mxu0 0
    %1034 = vmatpush2.bf16.msra.mxu0 0
    %1035 = vmatprep.subr.bf16.mxu0 0
    %1036 = vmatpush2.bf16.msra.mxu0 0
    %1037 = vmatprep.subr.bf16.mxu0 0
    %1038 = vmatpush2.bf16.msra.mxu0 0
    %1039 = vmatprep.subr.bf16.mxu0 0
    %1040 = vmatpush2.bf16.msra.mxu0 0
    %1041 = vmatprep.subr.bf16.mxu0 0
    %1042 = vmatpush2.bf16.msra.mxu0 0
    %1043 = vmatprep.subr.bf16.mxu0 0
    %1044 = vmatpush2.bf16.msra.mxu0 0
    %1045 = vmatprep.subr.bf16.mxu0 0
    %1046 = vmatpush2.bf16.msra.mxu0 0
    %1047 = vmatprep.mubr.bf16.mxu0 0
    %1048 = vmatmul.mubr.bf16.gmra.mxu0 %v1013
    %v1049 = vpop.f32.mrf.mxu0
    %v1050 = vadd.f32 0.0, %v1049
    %v1051 = vpop.f32.mrf.mxu0
    %v1052 = vpop.f32.mrf.mxu0
    %v1053 = vpop.f32.mrf.mxu0
    %1054 = vdwg.mxu0
    %v1055 = vadd.f32 %v1007, %v1050
    %v1056 = vxor.u32 %v1055, 2147483648
    %v1057 = vmul.f32 %v1056, 1.442695
    %v1058 = vpow.pop %v1057
    %v1059 = vadd.f32 %v1058, 1.0
    %v1060 = vrcp.pop %v1059
    %v1061 = vmul.f32 1.0, %v1060
    %v1062 = vtanh.pop %v1055
    %v1063 = vmul.f32 %v1061, %v989
    %1065 = vrot.lane.b32.xlu0 %v1062, 64
    %v1066 = vpop.permute.xlu0 %1065
    %v1068 = vmul.f32 %v1061, %v1066
    %1070 = vrot.lane.b32.xlu0 %v1068, 32
    %v1071 = vpop.permute.xlu0 %1070
    %v1073 = vadd.f32 %v1063, %v1071
    %v1074 = vtanh.pop %v1073
    %1076 = vrot.lane.b32.xlu0 %v1074, 64
    %v1077 = vpop.permute.xlu0 %1076
    %v1079 = vmul.f32 %v1061, %v1077
    %1081 = vrot.lane.b32.xlu0 %v1079, 32
    %v1082 = vpop.permute.xlu0 %1081
    %1084 = vst.msk [vmem:[#allocation3 + $0x7] sm:$0x1] %vm478, %v1082
    %1085 = vst.msk [vmem:[#allocation3 + $0xe] sm:$0x2] %vm480, %v1082
    %v1086 = vld [vmem:[#allocation3] sm:$0xff]
    %v1087 = vld [vmem:[#allocation3 + $0x8] sm:$0xff]
    %v1088 = vpack.c.bf16 %v1087, %v1086
    %v1089 = vlaneseq
    %v1090 = vshrl.u32 %v1089, 7
    %v1091 = vsub.s32 0, %v1090
    %v1092 = vrot.slane %v87, %v1091
    %v1097 = vunpack.c.l.b16 %v72
    %v1098 = vunpack.c.l.b16 %v73
    %v1099 = vunpack.c.l.b16 %v74
    %v1100 = vunpack.c.l.b16 %v75
    %v1101 = vpack.c.b16 %v1098, %v1097
    %v1102 = vpack.c.b16 %v1100, %v1099
    %v1106 = vsel %vm105, %v1088, 0
    %1108 = vmatprep.subr.bf16.mxu0 0
    %1109 = vmatpush1.bf16.msra.mxu0 0
    %1110 = vmatprep.subr.bf16.mxu0 0
    %1111 = vmatpush1.bf16.msra.mxu0 0
    %1112 = vmatprep.subr.bf16.mxu0 0
    %1113 = vmatpush1.bf16.msra.mxu0 0
    %1114 = vmatprep.subr.bf16.mxu0 0
    %1115 = vmatpush1.bf16.msra.mxu0 0
    %1116 = vmatprep.subr.bf16.mxu0 0
    %1117 = vmatpush1.bf16.msra.mxu0 0
    %1118 = vmatprep.subr.bf16.mxu0 0
    %1119 = vmatpush1.bf16.msra.mxu0 0
    %1120 = vmatprep.subr.bf16.mxu0 0
    %1121 = vmatpush1.bf16.msra.mxu0 %v1102
    %1122 = vmatprep.subr.bf16.mxu0 0
    %1123 = vmatpush1.bf16.msra.mxu0 %v1101
    %1124 = vmatprep.subr.bf16.mxu0 0
    %1125 = vmatpush2.bf16.msra.mxu0 0
    %1126 = vmatprep.subr.bf16.mxu0 0
    %1127 = vmatpush2.bf16.msra.mxu0 0
    %1128 = vmatprep.subr.bf16.mxu0 0
    %1129 = vmatpush2.bf16.msra.mxu0 0
    %1130 = vmatprep.subr.bf16.mxu0 0
    %1131 = vmatpush2.bf16.msra.mxu0 0
    %1132 = vmatprep.subr.bf16.mxu0 0
    %1133 = vmatpush2.bf16.msra.mxu0 0
    %1134 = vmatprep.subr.bf16.mxu0 0
    %1135 = vmatpush2.bf16.msra.mxu0 0
    %1136 = vmatprep.subr.bf16.mxu0 0
    %1137 = vmatpush2.bf16.msra.mxu0 0
    %1138 = vmatprep.subr.bf16.mxu0 0
    %1139 = vmatpush2.bf16.msra.mxu0 0
    %1140 = vmatprep.mubr.bf16.mxu0 0
    %1141 = vmatmul.mubr.bf16.gmra.mxu0 %v1106
    %v1142 = vpop.f32.mrf.mxu0
    %v1143 = vadd.f32 %v1092, %v1142
    %v1144 = vpop.f32.mrf.mxu0
    %v1145 = vpop.f32.mrf.mxu0
    %v1146 = vadd.f32 %v1092, %v1145
    %v1147 = vpop.f32.mrf.mxu0
    %1148 = vdwg.mxu0
    %v1149 = vpack.c.bf16 %v1079, %v1079
    %v1150 = vlaneseq
    %v1151 = vshrl.u32 %v1150, 7
    %v1152 = vsub.s32 0, %v1151
    %v1153 = vrot.slane %v88, %v1152
    %1155 = vrot.lane.b32.xlu0 %v1149, 32
    %v1156 = vpop.permute.xlu0 %1155
    %v1161 = vunpack.c.l.b16 %v76
    %v1162 = vunpack.c.l.b16 %v77
    %v1163 = vunpack.c.l.b16 %v78
    %v1164 = vunpack.c.l.b16 %v79
    %v1165 = vpack.c.b16 %v1162, %v1161
    %v1166 = vpack.c.b16 %v1164, %v1163
    %v1170 = vsel %vm105, %v1156, 0
    %1172 = vmatprep.subr.bf16.mxu0 0
    %1173 = vmatpush1.bf16.msra.mxu0 0
    %1174 = vmatprep.subr.bf16.mxu0 0
    %1175 = vmatpush1.bf16.msra.mxu0 0
    %1176 = vmatprep.subr.bf16.mxu0 0
    %1177 = vmatpush1.bf16.msra.mxu0 0
    %1178 = vmatprep.subr.bf16.mxu0 0
    %1179 = vmatpush1.bf16.msra.mxu0 0
    %1180 = vmatprep.subr.bf16.mxu0 0
    %1181 = vmatpush1.bf16.msra.mxu0 0
    %1182 = vmatprep.subr.bf16.mxu0 0
    %1183 = vmatpush1.bf16.msra.mxu0 0
    %1184 = vmatprep.subr.bf16.mxu0 0
    %1185 = vmatpush1.bf16.msra.mxu0 %v1166
    %1186 = vmatprep.subr.bf16.mxu0 0
    %1187 = vmatpush1.bf16.msra.mxu0 %v1165
    %1188 = vmatprep.subr.bf16.mxu0 0
    %1189 = vmatpush2.bf16.msra.mxu0 0
    %1190 = vmatprep.subr.bf16.mxu0 0
    %1191 = vmatpush2.bf16.msra.mxu0 0
    %1192 = vmatprep.subr.bf16.mxu0 0
    %1193 = vmatpush2.bf16.msra.mxu0 0
    %1194 = vmatprep.subr.bf16.mxu0 0
    %1195 = vmatpush2.bf16.msra.mxu0 0
    %1196 = vmatprep.subr.bf16.mxu0 0
    %1197 = vmatpush2.bf16.msra.mxu0 0
    %1198 = vmatprep.subr.bf16.mxu0 0
    %1199 = vmatpush2.bf16.msra.mxu0 0
    %1200 = vmatprep.subr.bf16.mxu0 0
    %1201 = vmatpush2.bf16.msra.mxu0 0
    %1202 = vmatprep.subr.bf16.mxu0 0
    %1203 = vmatpush2.bf16.msra.mxu0 0
    %1204 = vmatprep.mubr.bf16.mxu0 0
    %1205 = vmatmul.mubr.bf16.gmra.mxu0 %v1170
    %v1206 = vpop.f32.mrf.mxu0
    %v1207 = vadd.f32 %v1153, %v1206
    %v1208 = vpop.f32.mrf.mxu0
    %v1209 = vpop.f32.mrf.mxu0
    %v1210 = vpop.f32.mrf.mxu0
    %1211 = vdwg.mxu0
    %v1212 = vlaneseq
    %v1213 = vshrl.u32 %v1212, 7
    %v1214 = vsub.s32 0, %v1213
    %v1215 = vrot.slane %v1207, %v1214
    %v1216 = vlaneseq
    %v1217 = vshrl.u32 %v1216, 7
    %v1218 = vsub.s32 1, %v1217
    %v1219 = vrot.slane %v1207, %v1218
    %v1220 = vadd.f32 %v1143, %v1215
    %v1221 = vadd.f32 %v1146, %v1219
    %v1222 = vtanh.pop %v1220
    %v1223 = vtanh.pop %v1221
    %v1224 = vpack.c.bf16 %v1223, %v1222
    %v1225 = vlaneseq
    %v1226 = vshrl.u32 %v1225, 7
    %v1227 = vsub.s32 0, %v1226
    %v1228 = vrot.slane %v89, %v1227
    %v1233 = vunpack.c.l.b16 %v80
    %v1234 = vunpack.c.l.b16 %v81
    %v1235 = vunpack.c.l.b16 %v82
    %v1236 = vunpack.c.l.b16 %v83
    %v1237 = vpack.c.b16 %v1234, %v1233
    %v1238 = vpack.c.b16 %v1236, %v1235
    %v1242 = vsel %vm105, %v1224, 0
    %1244 = vmatprep.subr.bf16.mxu0 0
    %1245 = vmatpush1.bf16.msra.mxu0 0
    %1246 = vmatprep.subr.bf16.mxu0 0
    %1247 = vmatpush1.bf16.msra.mxu0 0
    %1248 = vmatprep.subr.bf16.mxu0 0
    %1249 = vmatpush1.bf16.msra.mxu0 0
    %1250 = vmatprep.subr.bf16.mxu0 0
    %1251 = vmatpush1.bf16.msra.mxu0 0
    %1252 = vmatprep.subr.bf16.mxu0 0
    %1253 = vmatpush1.bf16.msra.mxu0 0
    %1254 = vmatprep.subr.bf16.mxu0 0
    %1255 = vmatpush1.bf16.msra.mxu0 0
    %1256 = vmatprep.subr.bf16.mxu0 0
    %1257 = vmatpush1.bf16.msra.mxu0 %v1238
    %1258 = vmatprep.subr.bf16.mxu0 0
    %1259 = vmatpush1.bf16.msra.mxu0 %v1237
    %1260 = vmatprep.subr.bf16.mxu0 0
    %1261 = vmatpush2.bf16.msra.mxu0 0
    %1262 = vmatprep.subr.bf16.mxu0 0
    %1263 = vmatpush2.bf16.msra.mxu0 0
    %1264 = vmatprep.subr.bf16.mxu0 0
    %1265 = vmatpush2.bf16.msra.mxu0 0
    %1266 = vmatprep.subr.bf16.mxu0 0
    %1267 = vmatpush2.bf16.msra.mxu0 0
    %1268 = vmatprep.subr.bf16.mxu0 0
    %1269 = vmatpush2.bf16.msra.mxu0 0
    %1270 = vmatprep.subr.bf16.mxu0 0
    %1271 = vmatpush2.bf16.msra.mxu0 0
    %1272 = vmatprep.subr.bf16.mxu0 0
    %1273 = vmatpush2.bf16.msra.mxu0 0
    %1274 = vmatprep.subr.bf16.mxu0 0
    %1275 = vmatpush2.bf16.msra.mxu0 0
    %1276 = vmatprep.mubr.bf16.mxu0 0
    %1277 = vmatmul.mubr.bf16.gmra.mxu0 %v1242
    %v1278 = vpop.f32.mrf.mxu0
    %v1279 = vadd.f32 %v1228, %v1278
    %v1280 = vpop.f32.mrf.mxu0
    %v1281 = vpop.f32.mrf.mxu0
    %v1282 = vadd.f32 %v1228, %v1281
    %v1283 = vpop.f32.mrf.mxu0
    %1284 = vdwg.mxu0
    %vm1285 = vcmask 64512
    %v1286 = vsel %vm1285, %v1279, -inf
    %v1287 = vrot.slane %v1286, 4
    %v1288 = vmax.f32 %v1286, %v1287
    %v1289 = vrot.slane %v1288, 2
    %v1290 = vmax.f32 %v1288, %v1289
    %v1291 = vrot.slane %v1290, 1
    %v1292 = vmax.f32 %v1290, %v1291
    %v1293 = vsub.f32 %v1279, %v1292
    %v1294 = vmul.f32 %v1293, 1.442695
    %v1295 = vpow.pop %v1294
    %v1296 = vsel %vm1285, %v1295, 0.0
    %v1297 = vrot.slane %v1296, 4
    %v1298 = vadd.f32 %v1296, %v1297
    %v1299 = vrot.slane %v1298, 2
    %v1300 = vadd.f32 %v1298, %v1299
    %v1301 = vrot.slane %v1300, 1
    %v1302 = vadd.f32 %v1300, %v1301
    %v1303 = vrcp.pop %v1302
    %v1304 = vmul.f32 %v1295, %v1303
    %v1305 = vpack.c.bf16 %v1086, %v1086
    %v1306 = vpack.c.bf16 %v1304, %v1304
    %1307 = vxpose.xlu0.c.b16.start [1/8] %v1306, 128
    %1308 = vxpose.xlu0.c.b16.cont [2/8] 0, 128
    %1309 = vxpose.xlu0.c.b16.cont [3/8] 0, 128
    %1310 = vxpose.xlu0.c.b16.cont [4/8] 0, 128
    %1311 = vxpose.xlu0.c.b16.cont [5/8] 0, 128
    %1312 = vxpose.xlu0.c.b16.cont [6/8] 0, 128
    %1313 = vxpose.xlu0.c.b16.cont [7/8] 0, 128
    %1314 = vxpose.xlu0.c.b16.end [8/8] 0, 128
    %v1315 = vpop.trf.xlu0
    %v1316 = vpop.trf.xlu0
    %v1317 = vpop.trf.xlu0
    %v1318 = vpop.trf.xlu0
    %v1319 = vpop.trf.xlu0
    %v1320 = vpop.trf.xlu0
    %v1321 = vpop.trf.xlu0
    %v1322 = vpop.trf.xlu0
    %v1324 = vsel %vm1285, %v1315, 0
    %vm1326 = vcmask 1043456
    %v1328 = vsel %vm1326, %v1305, 0
    %1330 = vmatprep.subr.bf16.mxu0 0
    %1331 = vmatpush1.bf16.msra.mxu0 0
    %1332 = vmatprep.subr.bf16.mxu0 0
    %1333 = vmatpush1.bf16.msra.mxu0 0
    %1334 = vmatprep.subr.bf16.mxu0 0
    %1335 = vmatpush1.bf16.msra.mxu0 0
    %1336 = vmatprep.subr.bf16.mxu0 0
    %1337 = vmatpush1.bf16.msra.mxu0 0
    %1338 = vmatprep.subr.bf16.mxu0 0
    %1339 = vmatpush1.bf16.msra.mxu0 0
    %1340 = vmatprep.subr.bf16.mxu0 0
    %1341 = vmatpush1.bf16.msra.mxu0 0
    %1342 = vmatprep.subr.bf16.mxu0 0
    %1343 = vmatpush1.bf16.msra.mxu0 0
    %1344 = vmatprep.subr.bf16.mxu0 0
    %1345 = vmatpush1.bf16.msra.mxu0 %v1328
    %1346 = vmatprep.subr.bf16.mxu0 0
    %1347 = vmatpush2.bf16.msra.mxu0 0
    %1348 = vmatprep.subr.bf16.mxu0 0
    %1349 = vmatpush2.bf16.msra.mxu0 0
    %1350 = vmatprep.subr.bf16.mxu0 0
    %1351 = vmatpush2.bf16.msra.mxu0 0
    %1352 = vmatprep.subr.bf16.mxu0 0
    %1353 = vmatpush2.bf16.msra.mxu0 0
    %1354 = vmatprep.subr.bf16.mxu0 0
    %1355 = vmatpush2.bf16.msra.mxu0 0
    %1356 = vmatprep.subr.bf16.mxu0 0
    %1357 = vmatpush2.bf16.msra.mxu0 0
    %1358 = vmatprep.subr.bf16.mxu0 0
    %1359 = vmatpush2.bf16.msra.mxu0 0
    %1360 = vmatprep.subr.bf16.mxu0 0
    %1361 = vmatpush2.bf16.msra.mxu0 0
    %1362 = vmatprep.mubr.bf16.mxu0 0
    %1363 = vmatmul.mubr.bf16.gmra.mxu0 %v1324
    %v1364 = vpop.f32.mrf.mxu0
    %v1365 = vadd.f32 0.0, %v1364
    %v1366 = vpop.f32.mrf.mxu0
    %v1367 = vpop.f32.mrf.mxu0
    %v1368 = vpop.f32.mrf.mxu0
    %1369 = vdwg.mxu0
    %v1370 = vsel %vm1285, %v1282, -inf
    %v1371 = vrot.slane %v1370, 4
    %v1372 = vmax.f32 %v1370, %v1371
    %v1373 = vrot.slane %v1372, 2
    %v1374 = vmax.f32 %v1372, %v1373
    %v1375 = vrot.slane %v1374, 1
    %v1376 = vmax.f32 %v1374, %v1375
    %v1377 = vsub.f32 %v1282, %v1376
    %v1378 = vmul.f32 %v1377, 1.442695
    %v1379 = vpow.pop %v1378
    %v1380 = vsel %vm1285, %v1379, 0.0
    %v1381 = vrot.slane %v1380, 4
    %v1382 = vadd.f32 %v1380, %v1381
    %v1383 = vrot.slane %v1382, 2
    %v1384 = vadd.f32 %v1382, %v1383
    %v1385 = vrot.slane %v1384, 1
    %v1386 = vadd.f32 %v1384, %v1385
    %v1387 = vrcp.pop %v1386
    %v1388 = vmul.f32 %v1379, %v1387
    %v1389 = vpack.c.bf16 %v1087, %v1087
    %v1390 = vpack.c.bf16 %v1388, %v1388
    %1391 = vxpose.xlu0.c.b16.start [1/8] %v1390, 128
    %1392 = vxpose.xlu0.c.b16.cont [2/8] 0, 128
    %1393 = vxpose.xlu0.c.b16.cont [3/8] 0, 128
    %1394 = vxpose.xlu0.c.b16.cont [4/8] 0, 128
    %1395 = vxpose.xlu0.c.b16.cont [5/8] 0, 128
    %1396 = vxpose.xlu0.c.b16.cont [6/8] 0, 128
    %1397 = vxpose.xlu0.c.b16.cont [7/8] 0, 128
    %1398 = vxpose.xlu0.c.b16.end [8/8] 0, 128
    %v1399 = vpop.trf.xlu0
    %v1400 = vpop.trf.xlu0
    %v1401 = vpop.trf.xlu0
    %v1402 = vpop.trf.xlu0
    %v1403 = vpop.trf.xlu0
    %v1404 = vpop.trf.xlu0
    %v1405 = vpop.trf.xlu0
    %v1406 = vpop.trf.xlu0
    %v1408 = vsel %vm1285, %v1399, 0
    %v1411 = vsel %vm1326, %v1389, 0
    %1413 = vmatprep.subr.bf16.mxu0 0
    %1414 = vmatpush1.bf16.msra.mxu0 0
    %1415 = vmatprep.subr.bf16.mxu0 0
    %1416 = vmatpush1.bf16.msra.mxu0 0
    %1417 = vmatprep.subr.bf16.mxu0 0
    %1418 = vmatpush1.bf16.msra.mxu0 0
    %1419 = vmatprep.subr.bf16.mxu0 0
    %1420 = vmatpush1.bf16.msra.mxu0 0
    %1421 = vmatprep.subr.bf16.mxu0 0
    %1422 = vmatpush1.bf16.msra.mxu0 0
    %1423 = vmatprep.subr.bf16.mxu0 0
    %1424 = vmatpush1.bf16.msra.mxu0 0
    %1425 = vmatprep.subr.bf16.mxu0 0
    %1426 = vmatpush1.bf16.msra.mxu0 0
    %1427 = vmatprep.subr.bf16.mxu0 0
    %1428 = vmatpush1.bf16.msra.mxu0 %v1411
    %1429 = vmatprep.subr.bf16.mxu0 0
    %1430 = vmatpush2.bf16.msra.mxu0 0
    %1431 = vmatprep.subr.bf16.mxu0 0
    %1432 = vmatpush2.bf16.msra.mxu0 0
    %1433 = vmatprep.subr.bf16.mxu0 0
    %1434 = vmatpush2.bf16.msra.mxu0 0
    %1435 = vmatprep.subr.bf16.mxu0 0
    %1436 = vmatpush2.bf16.msra.mxu0 0
    %1437 = vmatprep.subr.bf16.mxu0 0
    %1438 = vmatpush2.bf16.msra.mxu0 0
    %1439 = vmatprep.subr.bf16.mxu0 0
    %1440 = vmatpush2.bf16.msra.mxu0 0
    %1441 = vmatprep.subr.bf16.mxu0 0
    %1442 = vmatpush2.bf16.msra.mxu0 0
    %1443 = vmatprep.subr.bf16.mxu0 0
    %1444 = vmatpush2.bf16.msra.mxu0 0
    %1445 = vmatprep.mubr.bf16.mxu0 0
    %1446 = vmatmul.mubr.bf16.gmra.mxu0 %v1408
    %v1447 = vpop.f32.mrf.mxu0
    %v1448 = vadd.f32 0.0, %v1447
    %v1449 = vpop.f32.mrf.mxu0
    %v1450 = vpop.f32.mrf.mxu0
    %v1451 = vpop.f32.mrf.mxu0
    %1452 = vdwg.mxu0
    %v1453 = vadd.f32 %v316, %v1365
    %v1454 = vadd.f32 %v319, %v1448
    %v1455 = vsel %vm105, %v1453, 0.0
    %1456 = vadd.xlane.f32.xlu0 %v1455
    %v1457 = vpop.xlane.xlu0 %1456
    %v1458 = vsel %vm105, %v1454, 0.0
    %1459 = vadd.xlane.f32.xlu0 %v1458
    %v1460 = vpop.xlane.xlu0 %1459
    %v1461 = vmul.f32 %v1453, %v1453
    %v1462 = vmul.f32 %v1454, %v1454
    %v1463 = vsel %vm105, %v1461, 0.0
    %1464 = vadd.xlane.f32.xlu0 %v1463
    %v1465 = vpop.xlane.xlu0 %1464
    %v1466 = vsel %vm105, %v1462, 0.0
    %1467 = vadd.xlane.f32.xlu0 %v1466
    %v1468 = vpop.xlane.xlu0 %1467
    %v1469 = vadd.f32 %v1457, %v1460
    %v1470 = vadd.f32 %v1465, %v1468
    %v1471 = vmul.f32 %v1469, 0.015625
    %v1472 = vmul.f32 %v1470, 0.015625
    %v1473 = vmul.f32 %v1471, %v1471
    %v1474 = vsub.f32 %v1472, %v1473
    %v1475 = vmax.f32 %v1474, 0.0
    %v1476 = vadd.f32 %v1475, 1e-05
    %v1477 = vrsqrt.pop %v1476
    %1478 = vrot.lane.b32.xlu0 %v84, 92
    %v1479 = vpop.permute.xlu0 %1478
    %1480 = vrot.lane.b32.xlu0 %v85, 92
    %v1481 = vpop.permute.xlu0 %1480
    %v1484 = vmul.f32 %v1477, %v1479
    %v1485 = vmul.f32 %v1477, %v1481
    %1487 = vset.pattern.permute.xlu0 0
    %1488 = vperm.xlu0 %1487, %v1471
    %v1489 = vpop.permute.xlu0 %1488
    %v1491 = vsub.f32 %v1453, %v1489
    %v1492 = vsub.f32 %v1454, %v1489
    %1494 = vset.pattern.permute.xlu0 0
    %1495 = vperm.xlu0 %1494, %v1484
    %v1496 = vpop.permute.xlu0 %1495
    %1499 = vset.pattern.permute.xlu0 0
    %1500 = vperm.xlu0 %1499, %v1485
    %v1501 = vpop.permute.xlu0 %1500
    %v1503 = vmul.f32 %v1491, %v1496
    %v1504 = vmul.f32 %v1492, %v1501
    %1505 = vset.pattern.permute.xlu0 37
    %1506 = vperm.xlu0 %1505, %v84
    %v1507 = vpop.permute.xlu0 %1506
    %1509 = vset.pattern.permute.xlu0 37
    %1510 = vperm.xlu0 %1509, %v85
    %v1511 = vpop.permute.xlu0 %1510
    %v1513 = vadd.f32 %v1503, %v1507
    %v1514 = vadd.f32 %v1504, %v1511
    %1515 = vst.msk [vmem:[%s3] sm:$0xff] %vm105, %v1513
    %1516 = vst.msk [vmem:[%s3 + $0x8] sm:$0xff] %vm105, %v1514
    %1519 = vrot.lane.b32.xlu0 %v1365, 32
    %v1520 = vpop.permute.xlu0 %1519
    %1521 = vrot.lane.b32.xlu0 %v1448, 32
    %v1522 = vpop.permute.xlu0 %1521
    %vm1525 = vcmask 523520
    %1526 = vst.msk [vmem:[%s3] sm:$0xff] %vm1525, %v1520
    %1527 = vst.msk [vmem:[%s3 + $0x8] sm:$0xff] %vm1525, %v1522
    // Predicated region
    $region26: #{model_forward.1} parent=1 // pred_check
      _
    $region27: #{model_forward.1} parent=1 // pred_check_branch
      %1529 = sbr.rel (0) target = $region29
    $region28: #{model_forward.1} parent=1 // pred_region
      _
    $region29: #{model_forward.1} parent=1 // pred_fallthru
      _
    // Predicated region
    $region30: #{model_forward.1} parent=1 // pred_check
      _
    $region31: #{model_forward.1} parent=1 // pred_check_branch
      %1531 = sbr.rel (0) target = $region33
    $region32: #{model_forward.1} parent=1 // pred_region
      _
    $region33: #{model_forward.1} parent=1 // pred_fallthru
      _
    %1532 = vsyncpa [#allocation5], 1
    %1533 = vsyncpa [#allocation7], 1

</llo_original>
